<compile_context>
chip_gen: v7x
topology: tpu7x:2x2x1
jax: 0.10.0
libtpu: 0.0.40
codegen_flags: <defaults>
</compile_context>

<pallas_src>
import jax
import jax.numpy as jnp
from jax.experimental import pallas as pl
from jax.experimental.pallas import tpu as pltpu


_NEG_SLOPE = 0.01  # PyTorch nn.LeakyReLU default


def _leaky_relu(x):
    return jnp.where(x >= 0, x, _NEG_SLOPE * x)


def att0_16_kernel(emb_ref, wa_ref, ba_ref, vatt_ref, wv_ref, bv_ref,
                   wmp_ref, bmp_ref, out_ref):
    hp = jax.lax.Precision.HIGHEST
    f32 = jnp.float32

    tb, n_node, d = emb_ref.shape

    emb = emb_ref[...].astype(f32)                 # (tb, n_node, d)
    u = emb[:, 0:1, :]                             # (tb, 1, d)  user node
    items = emb[:, 1:, :]                          # (tb, n_node-1, d)
    ui = u * items                                 # user-item interaction

    # ---- Att_add_mp over ALL nodes (user node masked out of the softmax) ---
    # Flatten (tb, n_node, d) -> (tb*n_node, d): layout-preserving when
    # n_node == 8 (one full sublane group per batch row), so both projections
    # become a single shared-weight MXU matmul with M = tb*n_node.
    flat = emb.reshape(tb * n_node, d)
    hid = jnp.dot(flat, wa_ref[...], precision=hp,
                  preferred_element_type=f32) + ba_ref[...]
    hid = _leaky_relu(hid)                                          # (tb*n, d)
    val = jnp.dot(flat, wv_ref[...], precision=hp,
                  preferred_element_type=f32) + bv_ref[...]         # (tb*n, d)

    # Additive scores: VPU multiply + lane reduce (no M=1 matvec on the MXU).
    scores = jnp.sum(hid * vatt_ref[...], axis=-1, keepdims=True)   # (tb*n, 1)
    scores = scores.reshape(tb, n_node, 1)
    val = val.reshape(tb, n_node, d)

    # Mask the user node (index 0): softmax runs over item nodes only.
    node = jax.lax.broadcasted_iota(jnp.int32, (tb, n_node, 1), 1)
    scores = jnp.where(node == 0, -jnp.inf, scores)

    # Numerically stable softmax over the node (sublane) axis.
    m = jnp.max(scores, axis=-2, keepdims=True)                     # (tb, 1, 1)
    p = jnp.exp(scores - m)                                         # node 0 -> 0
    denom = jnp.sum(p, axis=-2, keepdims=True)
    alphas = p * pl.reciprocal(denom, approx=True)                  # (tb, n, 1)

    # Attentive pooled message (user node has zero weight).
    msg = jnp.sum(alphas * val, axis=-2)                            # (tb, d)

    # Message-passing linear (self.mp_w): one (tb, d) @ (d, d) MXU matmul.
    msg = jnp.dot(msg, wmp_ref[...], precision=hp,
                  preferred_element_type=f32) + bmp_ref[...]        # (tb, d)

    # ui + message, LeakyReLU epilogue.  Dropout = identity (eval).
    out = _leaky_relu(ui + msg[:, None, :])                         # (tb, n-1, d)
    out_ref[...] = out.astype(out_ref.dtype)


def att0_16_forward(embeddings, wa, ba, v_att, wv, bv, wmp, bmp, *,
                    block_bs=2048):
    """embeddings: (bs, num_node, em_dim); weights in PyTorch (out, in) layout.

    Returns (bs, num_node - 1, em_dim) in the embeddings dtype."""
    embeddings = jnp.asarray(embeddings)
    if not jnp.issubdtype(embeddings.dtype, jnp.floating):
        embeddings = embeddings.astype(jnp.float32)
    bs, num_node, d = embeddings.shape
    n_items = num_node - 1

    f32 = lambda x: jnp.asarray(x, jnp.float32)
    # Pre-transpose Linear weights (out,in) -> (in,out) once so the kernel
    # contracts with plain `x @ W_t` flattened matmuls.
    wa_t, wv_t, wmp_t = f32(wa).T, f32(wv).T, f32(wmp).T
    ba = f32(ba).reshape(1, d)
    bv = f32(bv).reshape(1, d)
    bmp = f32(bmp).reshape(1, d)
    v_att = f32(v_att).reshape(1, d)

    # Batch tiling: prefer a tile that divides bs (avoids a full-array jnp.pad
    # HBM round trip); fall back to padding only if no large-enough divisor.
    tb = min(block_bs, bs)
    if bs % tb != 0:
        best = max(t for t in range(1, tb + 1) if bs % t == 0)
        if 4 * best >= tb:
            tb = best
    n_blocks = pl.cdiv(bs, tb)
    padded_bs = n_blocks * tb
    if padded_bs != bs:
        embeddings = jnp.pad(embeddings,
                             ((0, padded_bs - bs), (0, 0), (0, 0)))

    weight_spec = pl.BlockSpec((d, d), lambda i: (0, 0))      # VMEM-resident
    bias_spec = pl.BlockSpec((1, d), lambda i: (0, 0))        # VMEM-resident

    grid_spec = pltpu.PrefetchScalarGridSpec(
        num_scalar_prefetch=0,
        grid=(n_blocks,),
        in_specs=[
            pl.BlockSpec((tb, num_node, d), lambda i: (i, 0, 0)),   # embeddings
            weight_spec, bias_spec,                                 # W_a^T, b_a
            bias_spec,                                              # v_att
            weight_spec, bias_spec,                                 # W_v^T, b_v
            weight_spec, bias_spec,                                 # mp_w^T, b_mp
        ],
        out_specs=pl.BlockSpec((tb, n_items, d), lambda i: (i, 0, 0)),
    )

    out = pl.pallas_call(
        att0_16_kernel,
        out_shape=jax.ShapeDtypeStruct((padded_bs, n_items, d),
                                       embeddings.dtype),
        grid_spec=grid_spec,
        compiler_params=pltpu.CompilerParams(
            dimension_semantics=("parallel",),
            vmem_limit_bytes=48 * 1024 * 1024,   # headroom; fits v7x 64 MiB
        ),
    )(embeddings, wa_t, ba, v_att, wv_t, bv, wmp_t, bmp)

    return out[:bs] if padded_bs != bs else out


def reference_forward(embeddings, wa, ba, v_att, wv, bv, wmp, bmp):
    """Pure-JAX reference for the same (assumed) att0_16 forward semantics."""
    hp = jax.lax.Precision.HIGHEST
    u = embeddings[:, :1, :]
    items = embeddings[:, 1:, :]
    ui = u * items
    hid = jax.nn.leaky_relu(
        jnp.einsum("bnd,ed->bne", items, wa, precision=hp) + ba)
    scores = jnp.sum(hid * v_att, axis=-1)                       # (bs, n)
    alphas = jax.nn.softmax(scores, axis=-1)[:, :, None]         # (bs, n, 1)
    value = jnp.einsum("bnd,ed->bne", items, wv, precision=hp) + bv
    att = jnp.sum(alphas * value, axis=1, keepdims=True)         # (bs, 1, D)
    att = jnp.einsum("bjd,ed->bje", att, wmp, precision=hp) + bmp
    return jax.nn.leaky_relu(ui + att)


if __name__ == "__main__":
    # Small deterministic configuration (opt.num_node = 8, opt.em_dim = 32).
    bs, num_node, em_dim = 2, 8, 32

    key = jax.random.PRNGKey(0)
    keys = jax.random.split(key, 8)

    embeddings = jax.random.normal(keys[0], (bs, num_node, em_dim),
                                   dtype=jnp.float32)

    # PyTorch-style uniform(-1/sqrt(fan_in), 1/sqrt(fan_in)) Linear init.
    bound = 1.0 / float(em_dim) ** 0.5

    def _lin(k, shape):
        return jax.random.uniform(k, shape, jnp.float32, -bound, bound)

    wa = _lin(keys[1], (em_dim, em_dim))     # Att_add_mp hidden projection
    ba = _lin(keys[2], (1, em_dim))
    v_att = _lin(keys[3], (1, em_dim))       # Att_add_mp score vector
    wv = _lin(keys[4], (em_dim, em_dim))     # Att_add_mp value projection
    bv = _lin(keys[5], (1, em_dim))
    wmp = _lin(keys[6], (em_dim, em_dim))    # self.mp_w
    bmp = _lin(keys[7], (1, em_dim))

    out = att0_16_forward(embeddings, wa, ba, v_att, wv, bv, wmp, bmp)
    out = jax.block_until_ready(out)

    ref = reference_forward(embeddings, wa, ba, v_att, wv, bv, wmp, bmp)
    assert out.shape == (bs, num_node - 1, em_dim), out.shape
    # 1e-3 tolerance: the only intended deviation from the f32 reference is
    # the EUP approximate reciprocal in the softmax normalizer (~2^-12 rel).
    assert jnp.allclose(out, ref, atol=1e-3, rtol=1e-3), (
        float(jnp.max(jnp.abs(out - ref))))
    print("KERNEL_OK")
</pallas_src>

<mosaic_0001>
module attributes {stable_mosaic.version = 11 : i64} {
  func.func @att0_16_kernel(%arg0: i32, %arg1: memref<2x8x32xf32, #tpu.memory_space<vmem>>, %arg2: memref<32x32xf32, #tpu.memory_space<vmem>>, %arg3: memref<1x32xf32, #tpu.memory_space<vmem>>, %arg4: memref<1x32xf32, #tpu.memory_space<vmem>>, %arg5: memref<32x32xf32, #tpu.memory_space<vmem>>, %arg6: memref<1x32xf32, #tpu.memory_space<vmem>>, %arg7: memref<32x32xf32, #tpu.memory_space<vmem>>, %arg8: memref<1x32xf32, #tpu.memory_space<vmem>>, %arg9: memref<2x7x32xf32, #tpu.memory_space<vmem>>) attributes {dimension_semantics = [#tpu.dimension_semantics<parallel>], iteration_bounds = array<i64: 1>, scalar_prefetch = 0 : i64, scratch_operands = 0 : i64, tpu.core_type = #tpu.core_type<tc>, window_params = [{transform_indices = @transform_0, window_bounds = array<i64: 2, 8, 32>}, {pipeline_mode = #tpu.pipeline_mode<synchronous>, transform_indices = @transform_1, window_bounds = array<i64: 32, 32>}, {pipeline_mode = #tpu.pipeline_mode<synchronous>, transform_indices = @transform_2, window_bounds = array<i64: 1, 32>}, {pipeline_mode = #tpu.pipeline_mode<synchronous>, transform_indices = @transform_3, window_bounds = array<i64: 1, 32>}, {pipeline_mode = #tpu.pipeline_mode<synchronous>, transform_indices = @transform_4, window_bounds = array<i64: 32, 32>}, {pipeline_mode = #tpu.pipeline_mode<synchronous>, transform_indices = @transform_5, window_bounds = array<i64: 1, 32>}, {pipeline_mode = #tpu.pipeline_mode<synchronous>, transform_indices = @transform_6, window_bounds = array<i64: 32, 32>}, {pipeline_mode = #tpu.pipeline_mode<synchronous>, transform_indices = @transform_7, window_bounds = array<i64: 1, 32>}, {transform_indices = @transform_8, window_bounds = array<i64: 2, 7, 32>}]} {
    %c0 = arith.constant 0 : index
    %c0_0 = arith.constant 0 : index
    %c0_1 = arith.constant 0 : index
    %0 = vector.load %arg1[%c0, %c0_0, %c0_1] : memref<2x8x32xf32, #tpu.memory_space<vmem>>, vector<2x8x32xf32>
    %1 = vector.extract_strided_slice %0 {offsets = [0, 0, 0], sizes = [2, 1, 32], strides = [1, 1, 1]} : vector<2x8x32xf32> to vector<2x1x32xf32>
    %2 = vector.extract_strided_slice %0 {offsets = [0, 1, 0], sizes = [2, 7, 32], strides = [1, 1, 1]} : vector<2x8x32xf32> to vector<2x7x32xf32>
    %3 = vector.broadcast %1 : vector<2x1x32xf32> to vector<2x7x32xf32>
    %4 = arith.mulf %3, %2 : vector<2x7x32xf32>
    %5 = vector.shape_cast %0 : vector<2x8x32xf32> to vector<16x32xf32>
    %c0_2 = arith.constant 0 : index
    %c0_3 = arith.constant 0 : index
    %6 = vector.load %arg2[%c0_2, %c0_3] : memref<32x32xf32, #tpu.memory_space<vmem>>, vector<32x32xf32>
    %cst = arith.constant dense<0.000000e+00> : vector<16x32xf32>
    %7 = tpu.matmul %5, %6, %cst {dimension_numbers = #tpu.dot_dimension_numbers<[1], [0], [0], [1], [0, 0, 1, 1], [], []>, precision = #tpu.contract_precision<fp32>} : vector<16x32xf32>, vector<32x32xf32>, vector<16x32xf32> -> vector<16x32xf32>
    %c0_4 = arith.constant 0 : index
    %c0_5 = arith.constant 0 : index
    %8 = vector.load %arg3[%c0_4, %c0_5] : memref<1x32xf32, #tpu.memory_space<vmem>>, vector<1x32xf32>
    %9 = vector.broadcast %8 : vector<1x32xf32> to vector<16x32xf32>
    %10 = arith.addf %7, %9 : vector<16x32xf32>
    %cst_6 = arith.constant 0.000000e+00 : f32
    %11 = vector.broadcast %cst_6 : f32 to vector<16x32xf32>
    %12 = arith.cmpf oge, %10, %11 : vector<16x32xf32>
    %cst_7 = arith.constant 0.00999999977 : f32
    %13 = vector.broadcast %cst_7 : f32 to vector<16x32xf32>
    %14 = arith.mulf %13, %10 : vector<16x32xf32>
    %15 = arith.select %12, %10, %14 : vector<16x32xi1>, vector<16x32xf32>
    %c0_8 = arith.constant 0 : index
    %c0_9 = arith.constant 0 : index
    %16 = vector.load %arg5[%c0_8, %c0_9] : memref<32x32xf32, #tpu.memory_space<vmem>>, vector<32x32xf32>
    %cst_10 = arith.constant dense<0.000000e+00> : vector<16x32xf32>
    %17 = tpu.matmul %5, %16, %cst_10 {dimension_numbers = #tpu.dot_dimension_numbers<[1], [0], [0], [1], [0, 0, 1, 1], [], []>, precision = #tpu.contract_precision<fp32>} : vector<16x32xf32>, vector<32x32xf32>, vector<16x32xf32> -> vector<16x32xf32>
    %c0_11 = arith.constant 0 : index
    %c0_12 = arith.constant 0 : index
    %18 = vector.load %arg6[%c0_11, %c0_12] : memref<1x32xf32, #tpu.memory_space<vmem>>, vector<1x32xf32>
    %19 = vector.broadcast %18 : vector<1x32xf32> to vector<16x32xf32>
    %20 = arith.addf %17, %19 : vector<16x32xf32>
    %c0_13 = arith.constant 0 : index
    %c0_14 = arith.constant 0 : index
    %21 = vector.load %arg4[%c0_13, %c0_14] : memref<1x32xf32, #tpu.memory_space<vmem>>, vector<1x32xf32>
    %22 = vector.broadcast %21 : vector<1x32xf32> to vector<16x32xf32>
    %23 = arith.mulf %15, %22 : vector<16x32xf32>
    %cst_15 = arith.constant dense<0.000000e+00> : vector<16xf32>
    %24 = vector.multi_reduction <add>, %23, %cst_15 [1] : vector<16x32xf32> to vector<16xf32>
    %25 = vector.shape_cast %24 : vector<16xf32> to vector<16x1xf32>
    %26 = vector.shape_cast %25 : vector<16x1xf32> to vector<2x8x1xf32>
    %27 = vector.shape_cast %20 : vector<16x32xf32> to vector<2x8x32xf32>
    %28 = tpu.iota {dimensions = array<i32: 1>} : vector<2x8x1xi32>
    %c0_i32 = arith.constant 0 : i32
    %29 = vector.broadcast %c0_i32 : i32 to vector<2x8x1xi32>
    %30 = arith.cmpi eq, %28, %29 : vector<2x8x1xi32>
    %cst_16 = arith.constant 0xFF800000 : f32
    %31 = vector.broadcast %cst_16 : f32 to vector<2x8x1xf32>
    %32 = arith.select %30, %31, %26 : vector<2x8x1xi1>, vector<2x8x1xf32>
    %cst_17 = arith.constant dense<0xFF800000> : vector<2x1xf32>
    %33 = vector.multi_reduction <maximumf>, %32, %cst_17 [1] : vector<2x8x1xf32> to vector<2x1xf32>
    %34 = vector.shape_cast %33 : vector<2x1xf32> to vector<2x1x1xf32>
    %35 = vector.broadcast %34 : vector<2x1x1xf32> to vector<2x8x1xf32>
    %36 = arith.subf %32, %35 : vector<2x8x1xf32>
    %37 = math.exp %36 : vector<2x8x1xf32>
    %cst_18 = arith.constant dense<0.000000e+00> : vector<2x1xf32>
    %38 = vector.multi_reduction <add>, %37, %cst_18 [1] : vector<2x8x1xf32> to vector<2x1xf32>
    %39 = vector.shape_cast %38 : vector<2x1xf32> to vector<2x1x1xf32>
    %40 = tpu.reciprocal %39 {approx = true} : vector<2x1x1xf32> -> vector<2x1x1xf32>
    %41 = vector.broadcast %40 : vector<2x1x1xf32> to vector<2x8x1xf32>
    %42 = arith.mulf %37, %41 : vector<2x8x1xf32>
    %43 = vector.broadcast %42 : vector<2x8x1xf32> to vector<2x8x32xf32>
    %44 = arith.mulf %43, %27 : vector<2x8x32xf32>
    %cst_19 = arith.constant dense<0.000000e+00> : vector<2x32xf32>
    %45 = vector.multi_reduction <add>, %44, %cst_19 [1] : vector<2x8x32xf32> to vector<2x32xf32>
    %c0_20 = arith.constant 0 : index
    %c0_21 = arith.constant 0 : index
    %46 = vector.load %arg7[%c0_20, %c0_21] : memref<32x32xf32, #tpu.memory_space<vmem>>, vector<32x32xf32>
    %cst_22 = arith.constant dense<0.000000e+00> : vector<2x32xf32>
    %47 = tpu.matmul %45, %46, %cst_22 {dimension_numbers = #tpu.dot_dimension_numbers<[1], [0], [0], [1], [0, 0, 1, 1], [], []>, precision = #tpu.contract_precision<fp32>} : vector<2x32xf32>, vector<32x32xf32>, vector<2x32xf32> -> vector<2x32xf32>
    %c0_23 = arith.constant 0 : index
    %c0_24 = arith.constant 0 : index
    %48 = vector.load %arg8[%c0_23, %c0_24] : memref<1x32xf32, #tpu.memory_space<vmem>>, vector<1x32xf32>
    %49 = vector.broadcast %48 : vector<1x32xf32> to vector<2x32xf32>
    %50 = arith.addf %47, %49 : vector<2x32xf32>
    %51 = vector.shape_cast %50 : vector<2x32xf32> to vector<2x1x32xf32>
    %52 = vector.broadcast %51 : vector<2x1x32xf32> to vector<2x7x32xf32>
    %53 = arith.addf %4, %52 : vector<2x7x32xf32>
    %cst_25 = arith.constant 0.000000e+00 : f32
    %54 = vector.broadcast %cst_25 : f32 to vector<2x7x32xf32>
    %55 = arith.cmpf oge, %53, %54 : vector<2x7x32xf32>
    %cst_26 = arith.constant 0.00999999977 : f32
    %56 = vector.broadcast %cst_26 : f32 to vector<2x7x32xf32>
    %57 = arith.mulf %56, %53 : vector<2x7x32xf32>
    %58 = arith.select %55, %53, %57 : vector<2x7x32xi1>, vector<2x7x32xf32>
    %c0_27 = arith.constant 0 : index
    %c0_28 = arith.constant 0 : index
    %c0_29 = arith.constant 0 : index
    %59 = vector.load %arg9[%c0_27, %c0_28, %c0_29] : memref<2x7x32xf32, #tpu.memory_space<vmem>>, vector<2x7x32xf32>
    tpu.vector_store %arg9[%c0_27, %c0_28, %c0_29], %58 {strides = array<i32>} : memref<2x7x32xf32, #tpu.memory_space<vmem>>, vector<2x7x32xf32>,
    return
  }
  func.func @transform_0(%arg0: i32) -> (i32, i32, i32) {
    %c0_i32 = arith.constant 0 : i32
    %c0_i32_0 = arith.constant 0 : i32
    %c0_i32_1 = arith.constant 0 : i32
    return %arg0, %c0_i32, %c0_i32_0 : i32, i32, i32
  }
  func.func @transform_1(%arg0: i32) -> (i32, i32) {
    %c0_i32 = arith.constant 0 : i32
    %c0_i32_0 = arith.constant 0 : i32
    %c0_i32_1 = arith.constant 0 : i32
    return %c0_i32, %c0_i32_0 : i32, i32
  }
  func.func @transform_2(%arg0: i32) -> (i32, i32) {
    %c0_i32 = arith.constant 0 : i32
    %c0_i32_0 = arith.constant 0 : i32
    %c0_i32_1 = arith.constant 0 : i32
    return %c0_i32, %c0_i32_0 : i32, i32
  }
  func.func @transform_3(%arg0: i32) -> (i32, i32) {
    %c0_i32 = arith.constant 0 : i32
    %c0_i32_0 = arith.constant 0 : i32
    %c0_i32_1 = arith.constant 0 : i32
    return %c0_i32, %c0_i32_0 : i32, i32
  }
  func.func @transform_4(%arg0: i32) -> (i32, i32) {
    %c0_i32 = arith.constant 0 : i32
    %c0_i32_0 = arith.constant 0 : i32
    %c0_i32_1 = arith.constant 0 : i32
    return %c0_i32, %c0_i32_0 : i32, i32
  }
  func.func @transform_5(%arg0: i32) -> (i32, i32) {
    %c0_i32 = arith.constant 0 : i32
    %c0_i32_0 = arith.constant 0 : i32
    %c0_i32_1 = arith.constant 0 : i32
    return %c0_i32, %c0_i32_0 : i32, i32
  }
  func.func @transform_6(%arg0: i32) -> (i32, i32) {
    %c0_i32 = arith.constant 0 : i32
    %c0_i32_0 = arith.constant 0 : i32
    %c0_i32_1 = arith.constant 0 : i32
    return %c0_i32, %c0_i32_0 : i32, i32
  }
  func.func @transform_7(%arg0: i32) -> (i32, i32) {
    %c0_i32 = arith.constant 0 : i32
    %c0_i32_0 = arith.constant 0 : i32
    %c0_i32_1 = arith.constant 0 : i32
    return %c0_i32, %c0_i32_0 : i32, i32
  }
  func.func @transform_8(%arg0: i32) -> (i32, i32, i32) {
    %c0_i32 = arith.constant 0 : i32
    %c0_i32_0 = arith.constant 0 : i32
    %c0_i32_1 = arith.constant 0 : i32
    return %arg0, %c0_i32, %c0_i32_0 : i32, i32, i32
  }
}

</mosaic_0001>

<llo_original>
// kernel: tpu_custom_call.1
$region0: #{tpu_custom_call.1}
  #allocation0 [shape = 'u32[]', space=smem, size = 0x4, offset = 0x4, fixed_abs, tag = 'smem constant byte address 0x4 - core index']
  #allocation1 [shape = 'u32[144,128]{1,0:T(1,128)}', space=vmem, size = 0x12000, scoped, tag = 'internal scratch']
  %s0 = inlined_call_operand.hbm [shape: f32[2,8,32], index: 0, kind: input, shape index: {}]
  %s1 = inlined_call_operand.hbm [shape: f32[32,32], index: 1, kind: input, shape index: {}]
  %s2 = inlined_call_operand.vmem [shape: f32[1,32], index: 2, kind: input, shape index: {}]
  %s3 = inlined_call_operand.vmem [shape: f32[1,32], index: 3, kind: input, shape index: {}]
  %s4 = inlined_call_operand.hbm [shape: f32[32,32], index: 4, kind: input, shape index: {}]
  %s5 = inlined_call_operand.vmem [shape: f32[1,32], index: 5, kind: input, shape index: {}]
  %s6 = inlined_call_operand.hbm [shape: f32[32,32], index: 6, kind: input, shape index: {}]
  %s7 = inlined_call_operand.vmem [shape: f32[1,32], index: 7, kind: input, shape index: {}]
  %s8 = inlined_call_operand.vmem [shape: f32[2,7,32], index: 8, kind: output, shape index: {}]
  %s9 = sld [smem:[#allocation0]]
  $region58: #{tpu_custom_call.1} parent=0
    _
  %s11 = ssub.s32 1, %s9
  %s12 = scalar_select 0, %s11, %s9
  $region1: #{tpu_custom_call.1} parent=0
    #allocation2 [shape = 'u8[8192]{0}', space=vmem, size = 0x2000, scoped, tag = 'input window, operand 0, single buffered']
    #allocation3 [shape = 's32[1]{0}', space=sflag, size = 0x4, scoped, tag = 'scoped memory for tpu_custom_call.1']
    #allocation4 [shape = 'u8[16384]{0}', space=vmem, size = 0x4000, scoped, tag = 'input window, operand 1, single buffered']
    #allocation5 [shape = 's32[1]{0}', space=sflag, size = 0x4, scoped, tag = 'scoped memory for tpu_custom_call.1']
    #allocation6 [shape = 'u8[16384]{0}', space=vmem, size = 0x4000, scoped, tag = 'input window, operand 4, single buffered']
    #allocation7 [shape = 'u8[16384]{0}', space=vmem, size = 0x4000, scoped, tag = 'input window, operand 6, single buffered']
    #allocation8 [shape = 's32[1]{0}', space=sflag, size = 0x4, scoped, tag = 'scoped memory for tpu_custom_call.1']
    %13 = vsyncpa [#allocation3], 0
    %14 = vsyncpa [#allocation5], 0
    %15 = vsyncpa [#allocation8], 0
    // Predicated region
    $region2: #{tpu_custom_call.1} parent=1 // pred_check
      _
    $region3: #{tpu_custom_call.1} parent=1 // pred_check_branch
      %17 = sbr.rel (0) target = $region5
    $region4: #{tpu_custom_call.1} parent=1 // pred_region
      %s19 = ssub.s32 256, 256
      %20 = vsyncadd [#allocation3], %s19
      %s21 = sshll.u32 [#allocation2], 4
      %s22 = int_to_ptr.vmem [resolvable:$true] %s21
      %27 = dma.hbm_to_vmem [thread:$0]  %s0, 256, %s22, [#allocation3], 128, 128, 8
    $region5: #{tpu_custom_call.1} parent=1 // pred_fallthru
      _
    // Predicated region
    $region6: #{tpu_custom_call.1} parent=1 // pred_check
      _
    $region7: #{tpu_custom_call.1} parent=1 // pred_check_branch
      %29 = sbr.rel (0) target = $region9
    $region8: #{tpu_custom_call.1} parent=1 // pred_region
      %s31 = ssub.s32 512, 512
      %32 = vsyncadd [#allocation5], %s31
      %s33 = sshll.u32 [#allocation4], 4
      %s34 = int_to_ptr.vmem [resolvable:$true] %s33
      %39 = dma.hbm_to_vmem [thread:$0]  %s1, 512, %s34, [#allocation5], 128, 128, 8
    $region9: #{tpu_custom_call.1} parent=1 // pred_fallthru
      _
    // Predicated region
    $region10: #{tpu_custom_call.1} parent=1 // pred_check
      _
    $region11: #{tpu_custom_call.1} parent=1 // pred_check_branch
      %41 = sbr.rel (0) target = $region13
    $region12: #{tpu_custom_call.1} parent=1 // pred_region
      _
    $region13: #{tpu_custom_call.1} parent=1 // pred_fallthru
      _
    // Predicated region
    $region14: #{tpu_custom_call.1} parent=1 // pred_check
      _
    $region15: #{tpu_custom_call.1} parent=1 // pred_check_branch
      %43 = sbr.rel (0) target = $region17
    $region16: #{tpu_custom_call.1} parent=1 // pred_region
      _
    $region17: #{tpu_custom_call.1} parent=1 // pred_fallthru
      _
    // Predicated region
    $region18: #{tpu_custom_call.1} parent=1 // pred_check
      _
    $region19: #{tpu_custom_call.1} parent=1 // pred_check_branch
      %45 = sbr.rel (0) target = $region21
    $region20: #{tpu_custom_call.1} parent=1 // pred_region
      %s47 = ssub.s32 512, 512
      %48 = vsyncadd [#allocation5], %s47
      %s49 = sshll.u32 [#allocation6], 4
      %s50 = int_to_ptr.vmem [resolvable:$true] %s49
      %55 = dma.hbm_to_vmem [thread:$0]  %s4, 512, %s50, [#allocation5], 128, 128, 8
    $region21: #{tpu_custom_call.1} parent=1 // pred_fallthru
      _
    // Predicated region
    $region22: #{tpu_custom_call.1} parent=1 // pred_check
      _
    $region23: #{tpu_custom_call.1} parent=1 // pred_check_branch
      %57 = sbr.rel (0) target = $region25
    $region24: #{tpu_custom_call.1} parent=1 // pred_region
      _
    $region25: #{tpu_custom_call.1} parent=1 // pred_fallthru
      _
    // Predicated region
    $region26: #{tpu_custom_call.1} parent=1 // pred_check
      _
    $region27: #{tpu_custom_call.1} parent=1 // pred_check_branch
      %59 = sbr.rel (0) target = $region29
    $region28: #{tpu_custom_call.1} parent=1 // pred_region
      %s61 = ssub.s32 512, 512
      %62 = vsyncadd [#allocation8], %s61
      %s63 = sshll.u32 [#allocation7], 4
      %s64 = int_to_ptr.vmem [resolvable:$true] %s63
      %69 = dma.hbm_to_vmem [thread:$0]  %s6, 512, %s64, [#allocation8], 128, 128, 8
    $region29: #{tpu_custom_call.1} parent=1 // pred_fallthru
      _
    // Predicated region
    $region30: #{tpu_custom_call.1} parent=1 // pred_check
      _
    $region31: #{tpu_custom_call.1} parent=1 // pred_check_branch
      %71 = sbr.rel (0) target = $region33
    $region32: #{tpu_custom_call.1} parent=1 // pred_region
      _
    $region33: #{tpu_custom_call.1} parent=1 // pred_fallthru
      _
    // Predicated region
    $region34: #{tpu_custom_call.1} parent=1 // pred_check
      _
    $region35: #{tpu_custom_call.1} parent=1 // pred_check_branch
      %73 = sbr.rel (0) target = $region37
    $region36: #{tpu_custom_call.1} parent=1 // pred_region
      %74 = dma.done [#allocation3], 256
    $region37: #{tpu_custom_call.1} parent=1 // pred_fallthru
      _
    // Predicated region
    $region38: #{tpu_custom_call.1} parent=1 // pred_check
      _
    $region39: #{tpu_custom_call.1} parent=1 // pred_check_branch
      %76 = sbr.rel (0) target = $region41
    $region40: #{tpu_custom_call.1} parent=1 // pred_region
      %77 = dma.done [#allocation5], 512
    $region41: #{tpu_custom_call.1} parent=1 // pred_fallthru
      _
    // Predicated region
    $region42: #{tpu_custom_call.1} parent=1 // pred_check
      _
    $region43: #{tpu_custom_call.1} parent=1 // pred_check_branch
      %79 = sbr.rel (0) target = $region45
    $region44: #{tpu_custom_call.1} parent=1 // pred_region
      %80 = dma.done [#allocation5], 512
    $region45: #{tpu_custom_call.1} parent=1 // pred_fallthru
      _
    // Predicated region
    $region46: #{tpu_custom_call.1} parent=1 // pred_check
      _
    $region47: #{tpu_custom_call.1} parent=1 // pred_check_branch
      %82 = sbr.rel (0) target = $region49
    $region48: #{tpu_custom_call.1} parent=1 // pred_region
      %83 = dma.done [#allocation8], 512
    $region49: #{tpu_custom_call.1} parent=1 // pred_fallthru
      _
    %v84 = vld [vmem:[#allocation2] sm:$0xff]
    %v85 = vld [vmem:[#allocation2 + $0x8] sm:$0xff]
    %v86 = vlaneseq
    %v87 = vshrl.u32 %v86, 7
    %v88 = vsub.s32 0, %v87
    %v89 = vrot.slane %v84, %v88
    %v90 = vlaneseq
    %v91 = vshrl.u32 %v90, 7
    %v92 = vsub.s32 0, %v91
    %v93 = vrot.slane %v85, %v92
    %v94 = vmul.f32 %v89, %v84
    %v95 = vmul.f32 %v93, %v85
    %v96 = vld [vmem:[#allocation4] sm:$0xff]
    %v97 = vld [vmem:[#allocation4 + $0x8] sm:$0xff]
    %v98 = vld [vmem:[#allocation4 + $0x10] sm:$0xff]
    %v99 = vld [vmem:[#allocation4 + $0x18] sm:$0xff]
    %v100 = vld [vmem:[%s2] sm:$0x1]
    %v102 = vlaneseq
    %v103 = vshrl.u32 %v102, 7
    %v104 = vsub.s32 0, %v103
    %v105 = vrot.slane %v100, %v104
    %vm107 = vcmask 261120
    %v109 = vsel %vm107, %v84, 0
    %v112 = vsel %vm107, %v85, 0
    %114 = vmatprep.subr.mxu0 0.0
    %v115 = vand.u32 %v96, 4294901760
    %116 = vmatpush1.msra.mxu0 %v115
    %117 = vmatprep.subr.mxu0 0.0
    %v118 = vand.u32 %v97, 4294901760
    %119 = vmatpush1.msra.mxu0 %v118
    %120 = vmatprep.subr.mxu0 0.0
    %v121 = vand.u32 %v98, 4294901760
    %122 = vmatpush1.msra.mxu0 %v121
    %123 = vmatprep.subr.mxu0 0.0
    %v124 = vand.u32 %v99, 4294901760
    %125 = vmatpush1.msra.mxu0 %v124
    %126 = vmatprep.subr.mxu0 0.0
    %127 = vmatpush1.msra.mxu0 0.0
    %128 = vmatprep.subr.mxu0 0.0
    %129 = vmatpush1.msra.mxu0 0.0
    %130 = vmatprep.subr.mxu0 0.0
    %131 = vmatpush1.msra.mxu0 0.0
    %132 = vmatprep.subr.mxu0 0.0
    %133 = vmatpush1.msra.mxu0 0.0
    %134 = vmatprep.subr.mxu0 0.0
    %135 = vmatpush1.msra.mxu0 0.0
    %136 = vmatprep.subr.mxu0 0.0
    %137 = vmatpush1.msra.mxu0 0.0
    %138 = vmatprep.subr.mxu0 0.0
    %139 = vmatpush1.msra.mxu0 0.0
    %140 = vmatprep.subr.mxu0 0.0
    %141 = vmatpush1.msra.mxu0 0.0
    %142 = vmatprep.subr.mxu0 0.0
    %143 = vmatpush1.msra.mxu0 0.0
    %144 = vmatprep.subr.mxu0 0.0
    %145 = vmatpush1.msra.mxu0 0.0
    %146 = vmatprep.subr.mxu0 0.0
    %147 = vmatpush1.msra.mxu0 0.0
    %148 = vmatprep.subr.mxu0 0.0
    %149 = vmatpush1.msra.mxu0 0.0
    %150 = vmatprep.subr.mxu0 0.0
    %151 = vmatpush1.msra.mxu0 0.0
    %152 = vmatprep.subr.mxu0 0.0
    %153 = vmatpush1.msra.mxu0 0.0
    %154 = vmatprep.subr.mxu0 0.0
    %155 = vmatpush1.msra.mxu0 0.0
    %156 = vmatprep.subr.mxu0 0.0
    %157 = vmatpush1.msra.mxu0 0.0
    %158 = vmatprep.subr.mxu0 0.0
    %159 = vmatpush1.msra.mxu0 0.0
    %160 = vmatprep.subr.mxu0 0.0
    %161 = vmatpush1.msra.mxu0 0.0
    %162 = vmatprep.subr.mxu0 0.0
    %163 = vmatpush1.msra.mxu0 0.0
    %164 = vmatprep.subr.mxu0 0.0
    %165 = vmatpush1.msra.mxu0 0.0
    %166 = vmatprep.subr.mxu0 0.0
    %167 = vmatpush1.msra.mxu0 0.0
    %168 = vmatprep.subr.mxu0 0.0
    %169 = vmatpush1.msra.mxu0 0.0
    %170 = vmatprep.subr.mxu0 0.0
    %171 = vmatpush1.msra.mxu0 0.0
    %172 = vmatprep.subr.mxu0 0.0
    %173 = vmatpush1.msra.mxu0 0.0
    %174 = vmatprep.subr.mxu0 0.0
    %175 = vmatpush1.msra.mxu0 0.0
    %176 = vmatprep.subr.mxu0 0.0
    %177 = vmatpush1.msra.mxu0 0.0
    %178 = vmatprep.subr.mxu0 0.0
    %179 = vmatpush1.msra.mxu0 0.0
    %180 = vmatprep.subr.mxu0 0.0
    %181 = vmatpush1.msra.mxu0 0.0
    %182 = vmatprep.mubr.f32.mxu0 0.0
    %v183 = vand.u32 %v109, 4294901760
    %v184 = vsub.f32 %v109, %v183
    %v185 = vand.u32 %v184, 4294901760
    %v186 = vsub.f32 %v184, %v185
    %v187 = vand.u32 %v186, 4294901760
    %188 = vmatmul.mubr.f32.gmra.mrb[0].mxu0 %v187
    %v189 = vpop.f32.mrb[0].mxu0
    %v190 = vadd.f32 %v105, %v189
    %v191 = vpop.f32.mrb[0].mxu0
    %192 = vmatprep.mubr.f32.mxu0 0.0
    %v193 = vand.u32 %v112, 4294901760
    %v194 = vsub.f32 %v112, %v193
    %v195 = vand.u32 %v194, 4294901760
    %v196 = vsub.f32 %v194, %v195
    %v197 = vand.u32 %v196, 4294901760
    %198 = vmatmul.mubr.f32.gmra.mrb[0].mxu0 %v197
    %v199 = vpop.f32.mrb[0].mxu0
    %v200 = vadd.f32 %v105, %v199
    %v201 = vpop.f32.mrb[0].mxu0
    %202 = vdwg.mxu0
    %203 = vmatprep.subr.mxu0 0.0
    %v204 = vand.u32 %v96, 4294901760
    %v205 = vsub.f32 %v96, %v204
    %v206 = vand.u32 %v205, 4294901760
    %v207 = vsub.f32 %v205, %v206
    %v208 = vand.u32 %v207, 4294901760
    %209 = vmatpush1.msra.mxu0 %v208
    %210 = vmatprep.subr.mxu0 0.0
    %v211 = vand.u32 %v97, 4294901760
    %v212 = vsub.f32 %v97, %v211
    %v213 = vand.u32 %v212, 4294901760
    %v214 = vsub.f32 %v212, %v213
    %v215 = vand.u32 %v214, 4294901760
    %216 = vmatpush1.msra.mxu0 %v215
    %217 = vmatprep.subr.mxu0 0.0
    %v218 = vand.u32 %v98, 4294901760
    %v219 = vsub.f32 %v98, %v218
    %v220 = vand.u32 %v219, 4294901760
    %v221 = vsub.f32 %v219, %v220
    %v222 = vand.u32 %v221, 4294901760
    %223 = vmatpush1.msra.mxu0 %v222
    %224 = vmatprep.subr.mxu0 0.0
    %v225 = vand.u32 %v99, 4294901760
    %v226 = vsub.f32 %v99, %v225
    %v227 = vand.u32 %v226, 4294901760
    %v228 = vsub.f32 %v226, %v227
    %v229 = vand.u32 %v228, 4294901760
    %230 = vmatpush1.msra.mxu0 %v229
    %231 = vmatprep.subr.mxu0 0.0
    %232 = vmatpush1.msra.mxu0 0.0
    %233 = vmatprep.subr.mxu0 0.0
    %234 = vmatpush1.msra.mxu0 0.0
    %235 = vmatprep.subr.mxu0 0.0
    %236 = vmatpush1.msra.mxu0 0.0
    %237 = vmatprep.subr.mxu0 0.0
    %238 = vmatpush1.msra.mxu0 0.0
    %239 = vmatprep.subr.mxu0 0.0
    %240 = vmatpush1.msra.mxu0 0.0
    %241 = vmatprep.subr.mxu0 0.0
    %242 = vmatpush1.msra.mxu0 0.0
    %243 = vmatprep.subr.mxu0 0.0
    %244 = vmatpush1.msra.mxu0 0.0
    %245 = vmatprep.subr.mxu0 0.0
    %246 = vmatpush1.msra.mxu0 0.0
    %247 = vmatprep.subr.mxu0 0.0
    %248 = vmatpush1.msra.mxu0 0.0
    %249 = vmatprep.subr.mxu0 0.0
    %250 = vmatpush1.msra.mxu0 0.0
    %251 = vmatprep.subr.mxu0 0.0
    %252 = vmatpush1.msra.mxu0 0.0
    %253 = vmatprep.subr.mxu0 0.0
    %254 = vmatpush1.msra.mxu0 0.0
    %255 = vmatprep.subr.mxu0 0.0
    %256 = vmatpush1.msra.mxu0 0.0
    %257 = vmatprep.subr.mxu0 0.0
    %258 = vmatpush1.msra.mxu0 0.0
    %259 = vmatprep.subr.mxu0 0.0
    %260 = vmatpush1.msra.mxu0 0.0
    %261 = vmatprep.subr.mxu0 0.0
    %262 = vmatpush1.msra.mxu0 0.0
    %263 = vmatprep.subr.mxu0 0.0
    %264 = vmatpush1.msra.mxu0 0.0
    %265 = vmatprep.subr.mxu0 0.0
    %266 = vmatpush1.msra.mxu0 0.0
    %267 = vmatprep.subr.mxu0 0.0
    %268 = vmatpush1.msra.mxu0 0.0
    %269 = vmatprep.subr.mxu0 0.0
    %270 = vmatpush1.msra.mxu0 0.0
    %271 = vmatprep.subr.mxu0 0.0
    %272 = vmatpush1.msra.mxu0 0.0
    %273 = vmatprep.subr.mxu0 0.0
    %274 = vmatpush1.msra.mxu0 0.0
    %275 = vmatprep.subr.mxu0 0.0
    %276 = vmatpush1.msra.mxu0 0.0
    %277 = vmatprep.subr.mxu0 0.0
    %278 = vmatpush1.msra.mxu0 0.0
    %279 = vmatprep.subr.mxu0 0.0
    %280 = vmatpush1.msra.mxu0 0.0
    %281 = vmatprep.subr.mxu0 0.0
    %282 = vmatpush1.msra.mxu0 0.0
    %283 = vmatprep.subr.mxu0 0.0
    %284 = vmatpush1.msra.mxu0 0.0
    %285 = vmatprep.subr.mxu0 0.0
    %286 = vmatpush1.msra.mxu0 0.0
    %287 = vmatprep.mubr.f32.mxu0 0.0
    %v288 = vand.u32 %v109, 4294901760
    %289 = vmatmul.mubr.f32.gmra.mrb[0].mxu0 %v288
    %v290 = vpop.f32.mrb[0].mxu0
    %v291 = vadd.f32 %v190, %v290
    %v292 = vpop.f32.mrb[0].mxu0
    %293 = vmatprep.mubr.f32.mxu0 0.0
    %v294 = vand.u32 %v112, 4294901760
    %295 = vmatmul.mubr.f32.gmra.mrb[0].mxu0 %v294
    %v296 = vpop.f32.mrb[0].mxu0
    %v297 = vadd.f32 %v200, %v296
    %v298 = vpop.f32.mrb[0].mxu0
    %299 = vdwg.mxu0
    %300 = vmatprep.subr.mxu0 0.0
    %v301 = vand.u32 %v96, 4294901760
    %v302 = vsub.f32 %v96, %v301
    %303 = vmatpush1.msra.mxu0 %v302
    %304 = vmatprep.subr.mxu0 0.0
    %v305 = vand.u32 %v97, 4294901760
    %v306 = vsub.f32 %v97, %v305
    %307 = vmatpush1.msra.mxu0 %v306
    %308 = vmatprep.subr.mxu0 0.0
    %v309 = vand.u32 %v98, 4294901760
    %v310 = vsub.f32 %v98, %v309
    %311 = vmatpush1.msra.mxu0 %v310
    %312 = vmatprep.subr.mxu0 0.0
    %v313 = vand.u32 %v99, 4294901760
    %v314 = vsub.f32 %v99, %v313
    %315 = vmatpush1.msra.mxu0 %v314
    %316 = vmatprep.subr.mxu0 0.0
    %317 = vmatpush1.msra.mxu0 0.0
    %318 = vmatprep.subr.mxu0 0.0
    %319 = vmatpush1.msra.mxu0 0.0
    %320 = vmatprep.subr.mxu0 0.0
    %321 = vmatpush1.msra.mxu0 0.0
    %322 = vmatprep.subr.mxu0 0.0
    %323 = vmatpush1.msra.mxu0 0.0
    %324 = vmatprep.subr.mxu0 0.0
    %325 = vmatpush1.msra.mxu0 0.0
    %326 = vmatprep.subr.mxu0 0.0
    %327 = vmatpush1.msra.mxu0 0.0
    %328 = vmatprep.subr.mxu0 0.0
    %329 = vmatpush1.msra.mxu0 0.0
    %330 = vmatprep.subr.mxu0 0.0
    %331 = vmatpush1.msra.mxu0 0.0
    %332 = vmatprep.subr.mxu0 0.0
    %333 = vmatpush1.msra.mxu0 0.0
    %334 = vmatprep.subr.mxu0 0.0
    %335 = vmatpush1.msra.mxu0 0.0
    %336 = vmatprep.subr.mxu0 0.0
    %337 = vmatpush1.msra.mxu0 0.0
    %338 = vmatprep.subr.mxu0 0.0
    %339 = vmatpush1.msra.mxu0 0.0
    %340 = vmatprep.subr.mxu0 0.0
    %341 = vmatpush1.msra.mxu0 0.0
    %342 = vmatprep.subr.mxu0 0.0
    %343 = vmatpush1.msra.mxu0 0.0
    %344 = vmatprep.subr.mxu0 0.0
    %345 = vmatpush1.msra.mxu0 0.0
    %346 = vmatprep.subr.mxu0 0.0
    %347 = vmatpush1.msra.mxu0 0.0
    %348 = vmatprep.subr.mxu0 0.0
    %349 = vmatpush1.msra.mxu0 0.0
    %350 = vmatprep.subr.mxu0 0.0
    %351 = vmatpush1.msra.mxu0 0.0
    %352 = vmatprep.subr.mxu0 0.0
    %353 = vmatpush1.msra.mxu0 0.0
    %354 = vmatprep.subr.mxu0 0.0
    %355 = vmatpush1.msra.mxu0 0.0
    %356 = vmatprep.subr.mxu0 0.0
    %357 = vmatpush1.msra.mxu0 0.0
    %358 = vmatprep.subr.mxu0 0.0
    %359 = vmatpush1.msra.mxu0 0.0
    %360 = vmatprep.subr.mxu0 0.0
    %361 = vmatpush1.msra.mxu0 0.0
    %362 = vmatprep.subr.mxu0 0.0
    %363 = vmatpush1.msra.mxu0 0.0
    %364 = vmatprep.subr.mxu0 0.0
    %365 = vmatpush1.msra.mxu0 0.0
    %366 = vmatprep.subr.mxu0 0.0
    %367 = vmatpush1.msra.mxu0 0.0
    %368 = vmatprep.subr.mxu0 0.0
    %369 = vmatpush1.msra.mxu0 0.0
    %370 = vmatprep.subr.mxu0 0.0
    %371 = vmatpush1.msra.mxu0 0.0
    %372 = vmatprep.mubr.f32.mxu0 0.0
    %v373 = vand.u32 %v109, 4294901760
    %v374 = vsub.f32 %v109, %v373
    %375 = vmatmul.mubr.f32.gmra.mrb[0].mxu0 %v374
    %v376 = vpop.f32.mrb[0].mxu0
    %v377 = vadd.f32 %v291, %v376
    %v378 = vpop.f32.mrb[0].mxu0
    %379 = vmatprep.mubr.f32.mxu0 0.0
    %v380 = vand.u32 %v112, 4294901760
    %v381 = vsub.f32 %v112, %v380
    %382 = vmatmul.mubr.f32.gmra.mrb[0].mxu0 %v381
    %v383 = vpop.f32.mrb[0].mxu0
    %v384 = vadd.f32 %v297, %v383
    %v385 = vpop.f32.mrb[0].mxu0
    %386 = vdwg.mxu0
    %387 = vmatprep.subr.mxu0 0.0
    %v388 = vand.u32 %v96, 4294901760
    %389 = vmatpush1.msra.mxu0 %v388
    %390 = vmatprep.subr.mxu0 0.0
    %v391 = vand.u32 %v97, 4294901760
    %392 = vmatpush1.msra.mxu0 %v391
    %393 = vmatprep.subr.mxu0 0.0
    %v394 = vand.u32 %v98, 4294901760
    %395 = vmatpush1.msra.mxu0 %v394
    %396 = vmatprep.subr.mxu0 0.0
    %v397 = vand.u32 %v99, 4294901760
    %398 = vmatpush1.msra.mxu0 %v397
    %399 = vmatprep.subr.mxu0 0.0
    %400 = vmatpush1.msra.mxu0 0.0
    %401 = vmatprep.subr.mxu0 0.0
    %402 = vmatpush1.msra.mxu0 0.0
    %403 = vmatprep.subr.mxu0 0.0
    %404 = vmatpush1.msra.mxu0 0.0
    %405 = vmatprep.subr.mxu0 0.0
    %406 = vmatpush1.msra.mxu0 0.0
    %407 = vmatprep.subr.mxu0 0.0
    %408 = vmatpush1.msra.mxu0 0.0
    %409 = vmatprep.subr.mxu0 0.0
    %410 = vmatpush1.msra.mxu0 0.0
    %411 = vmatprep.subr.mxu0 0.0
    %412 = vmatpush1.msra.mxu0 0.0
    %413 = vmatprep.subr.mxu0 0.0
    %414 = vmatpush1.msra.mxu0 0.0
    %415 = vmatprep.subr.mxu0 0.0
    %416 = vmatpush1.msra.mxu0 0.0
    %417 = vmatprep.subr.mxu0 0.0
    %418 = vmatpush1.msra.mxu0 0.0
    %419 = vmatprep.subr.mxu0 0.0
    %420 = vmatpush1.msra.mxu0 0.0
    %421 = vmatprep.subr.mxu0 0.0
    %422 = vmatpush1.msra.mxu0 0.0
    %423 = vmatprep.subr.mxu0 0.0
    %424 = vmatpush1.msra.mxu0 0.0
    %425 = vmatprep.subr.mxu0 0.0
    %426 = vmatpush1.msra.mxu0 0.0
    %427 = vmatprep.subr.mxu0 0.0
    %428 = vmatpush1.msra.mxu0 0.0
    %429 = vmatprep.subr.mxu0 0.0
    %430 = vmatpush1.msra.mxu0 0.0
    %431 = vmatprep.subr.mxu0 0.0
    %432 = vmatpush1.msra.mxu0 0.0
    %433 = vmatprep.subr.mxu0 0.0
    %434 = vmatpush1.msra.mxu0 0.0
    %435 = vmatprep.subr.mxu0 0.0
    %436 = vmatpush1.msra.mxu0 0.0
    %437 = vmatprep.subr.mxu0 0.0
    %438 = vmatpush1.msra.mxu0 0.0
    %439 = vmatprep.subr.mxu0 0.0
    %440 = vmatpush1.msra.mxu0 0.0
    %441 = vmatprep.subr.mxu0 0.0
    %442 = vmatpush1.msra.mxu0 0.0
    %443 = vmatprep.subr.mxu0 0.0
    %444 = vmatpush1.msra.mxu0 0.0
    %445 = vmatprep.subr.mxu0 0.0
    %446 = vmatpush1.msra.mxu0 0.0
    %447 = vmatprep.subr.mxu0 0.0
    %448 = vmatpush1.msra.mxu0 0.0
    %449 = vmatprep.subr.mxu0 0.0
    %450 = vmatpush1.msra.mxu0 0.0
    %451 = vmatprep.subr.mxu0 0.0
    %452 = vmatpush1.msra.mxu0 0.0
    %453 = vmatprep.subr.mxu0 0.0
    %454 = vmatpush1.msra.mxu0 0.0
    %455 = vmatprep.mubr.f32.mxu0 0.0
    %v456 = vand.u32 %v109, 4294901760
    %v457 = vsub.f32 %v109, %v456
    %v458 = vand.u32 %v457, 4294901760
    %459 = vmatmul.mubr.f32.gmra.mrb[0].mxu0 %v458
    %v460 = vpop.f32.mrb[0].mxu0
    %v461 = vadd.f32 %v377, %v460
    %v462 = vpop.f32.mrb[0].mxu0
    %463 = vmatprep.mubr.f32.mxu0 0.0
    %v464 = vand.u32 %v112, 4294901760
    %v465 = vsub.f32 %v112, %v464
    %v466 = vand.u32 %v465, 4294901760
    %467 = vmatmul.mubr.f32.gmra.mrb[0].mxu0 %v466
    %v468 = vpop.f32.mrb[0].mxu0
    %v469 = vadd.f32 %v384, %v468
    %v470 = vpop.f32.mrb[0].mxu0
    %471 = vdwg.mxu0
    %472 = vmatprep.subr.mxu0 0.0
    %v473 = vand.u32 %v96, 4294901760
    %v474 = vsub.f32 %v96, %v473
    %v475 = vand.u32 %v474, 4294901760
    %476 = vmatpush1.msra.mxu0 %v475
    %477 = vmatprep.subr.mxu0 0.0
    %v478 = vand.u32 %v97, 4294901760
    %v479 = vsub.f32 %v97, %v478
    %v480 = vand.u32 %v479, 4294901760
    %481 = vmatpush1.msra.mxu0 %v480
    %482 = vmatprep.subr.mxu0 0.0
    %v483 = vand.u32 %v98, 4294901760
    %v484 = vsub.f32 %v98, %v483
    %v485 = vand.u32 %v484, 4294901760
    %486 = vmatpush1.msra.mxu0 %v485
    %487 = vmatprep.subr.mxu0 0.0
    %v488 = vand.u32 %v99, 4294901760
    %v489 = vsub.f32 %v99, %v488
    %v490 = vand.u32 %v489, 4294901760
    %491 = vmatpush1.msra.mxu0 %v490
    %492 = vmatprep.subr.mxu0 0.0
    %493 = vmatpush1.msra.mxu0 0.0
    %494 = vmatprep.subr.mxu0 0.0
    %495 = vmatpush1.msra.mxu0 0.0
    %496 = vmatprep.subr.mxu0 0.0
    %497 = vmatpush1.msra.mxu0 0.0
    %498 = vmatprep.subr.mxu0 0.0
    %499 = vmatpush1.msra.mxu0 0.0
    %500 = vmatprep.subr.mxu0 0.0
    %501 = vmatpush1.msra.mxu0 0.0
    %502 = vmatprep.subr.mxu0 0.0
    %503 = vmatpush1.msra.mxu0 0.0
    %504 = vmatprep.subr.mxu0 0.0
    %505 = vmatpush1.msra.mxu0 0.0
    %506 = vmatprep.subr.mxu0 0.0
    %507 = vmatpush1.msra.mxu0 0.0
    %508 = vmatprep.subr.mxu0 0.0
    %509 = vmatpush1.msra.mxu0 0.0
    %510 = vmatprep.subr.mxu0 0.0
    %511 = vmatpush1.msra.mxu0 0.0
    %512 = vmatprep.subr.mxu0 0.0
    %513 = vmatpush1.msra.mxu0 0.0
    %514 = vmatprep.subr.mxu0 0.0
    %515 = vmatpush1.msra.mxu0 0.0
    %516 = vmatprep.subr.mxu0 0.0
    %517 = vmatpush1.msra.mxu0 0.0
    %518 = vmatprep.subr.mxu0 0.0
    %519 = vmatpush1.msra.mxu0 0.0
    %520 = vmatprep.subr.mxu0 0.0
    %521 = vmatpush1.msra.mxu0 0.0
    %522 = vmatprep.subr.mxu0 0.0
    %523 = vmatpush1.msra.mxu0 0.0
    %524 = vmatprep.subr.mxu0 0.0
    %525 = vmatpush1.msra.mxu0 0.0
    %526 = vmatprep.subr.mxu0 0.0
    %527 = vmatpush1.msra.mxu0 0.0
    %528 = vmatprep.subr.mxu0 0.0
    %529 = vmatpush1.msra.mxu0 0.0
    %530 = vmatprep.subr.mxu0 0.0
    %531 = vmatpush1.msra.mxu0 0.0
    %532 = vmatprep.subr.mxu0 0.0
    %533 = vmatpush1.msra.mxu0 0.0
    %534 = vmatprep.subr.mxu0 0.0
    %535 = vmatpush1.msra.mxu0 0.0
    %536 = vmatprep.subr.mxu0 0.0
    %537 = vmatpush1.msra.mxu0 0.0
    %538 = vmatprep.subr.mxu0 0.0
    %539 = vmatpush1.msra.mxu0 0.0
    %540 = vmatprep.subr.mxu0 0.0
    %541 = vmatpush1.msra.mxu0 0.0
    %542 = vmatprep.subr.mxu0 0.0
    %543 = vmatpush1.msra.mxu0 0.0
    %544 = vmatprep.subr.mxu0 0.0
    %545 = vmatpush1.msra.mxu0 0.0
    %546 = vmatprep.subr.mxu0 0.0
    %547 = vmatpush1.msra.mxu0 0.0
    %548 = vmatprep.mubr.f32.mxu0 0.0
    %v549 = vand.u32 %v109, 4294901760
    %550 = vmatmul.mubr.f32.gmra.mrb[0].mxu0 %v549
    %v551 = vpop.f32.mrb[0].mxu0
    %v552 = vadd.f32 %v461, %v551
    %v553 = vpop.f32.mrb[0].mxu0
    %554 = vmatprep.mubr.f32.mxu0 0.0
    %v555 = vand.u32 %v112, 4294901760
    %556 = vmatmul.mubr.f32.gmra.mrb[0].mxu0 %v555
    %v557 = vpop.f32.mrb[0].mxu0
    %v558 = vadd.f32 %v469, %v557
    %v559 = vpop.f32.mrb[0].mxu0
    %560 = vdwg.mxu0
    %561 = vmatprep.subr.mxu0 0.0
    %v562 = vand.u32 %v96, 4294901760
    %563 = vmatpush1.msra.mxu0 %v562
    %564 = vmatprep.subr.mxu0 0.0
    %v565 = vand.u32 %v97, 4294901760
    %566 = vmatpush1.msra.mxu0 %v565
    %567 = vmatprep.subr.mxu0 0.0
    %v568 = vand.u32 %v98, 4294901760
    %569 = vmatpush1.msra.mxu0 %v568
    %570 = vmatprep.subr.mxu0 0.0
    %v571 = vand.u32 %v99, 4294901760
    %572 = vmatpush1.msra.mxu0 %v571
    %573 = vmatprep.subr.mxu0 0.0
    %574 = vmatpush1.msra.mxu0 0.0
    %575 = vmatprep.subr.mxu0 0.0
    %576 = vmatpush1.msra.mxu0 0.0
    %577 = vmatprep.subr.mxu0 0.0
    %578 = vmatpush1.msra.mxu0 0.0
    %579 = vmatprep.subr.mxu0 0.0
    %580 = vmatpush1.msra.mxu0 0.0
    %581 = vmatprep.subr.mxu0 0.0
    %582 = vmatpush1.msra.mxu0 0.0
    %583 = vmatprep.subr.mxu0 0.0
    %584 = vmatpush1.msra.mxu0 0.0
    %585 = vmatprep.subr.mxu0 0.0
    %586 = vmatpush1.msra.mxu0 0.0
    %587 = vmatprep.subr.mxu0 0.0
    %588 = vmatpush1.msra.mxu0 0.0
    %589 = vmatprep.subr.mxu0 0.0
    %590 = vmatpush1.msra.mxu0 0.0
    %591 = vmatprep.subr.mxu0 0.0
    %592 = vmatpush1.msra.mxu0 0.0
    %593 = vmatprep.subr.mxu0 0.0
    %594 = vmatpush1.msra.mxu0 0.0
    %595 = vmatprep.subr.mxu0 0.0
    %596 = vmatpush1.msra.mxu0 0.0
    %597 = vmatprep.subr.mxu0 0.0
    %598 = vmatpush1.msra.mxu0 0.0
    %599 = vmatprep.subr.mxu0 0.0
    %600 = vmatpush1.msra.mxu0 0.0
    %601 = vmatprep.subr.mxu0 0.0
    %602 = vmatpush1.msra.mxu0 0.0
    %603 = vmatprep.subr.mxu0 0.0
    %604 = vmatpush1.msra.mxu0 0.0
    %605 = vmatprep.subr.mxu0 0.0
    %606 = vmatpush1.msra.mxu0 0.0
    %607 = vmatprep.subr.mxu0 0.0
    %608 = vmatpush1.msra.mxu0 0.0
    %609 = vmatprep.subr.mxu0 0.0
    %610 = vmatpush1.msra.mxu0 0.0
    %611 = vmatprep.subr.mxu0 0.0
    %612 = vmatpush1.msra.mxu0 0.0
    %613 = vmatprep.subr.mxu0 0.0
    %614 = vmatpush1.msra.mxu0 0.0
    %615 = vmatprep.subr.mxu0 0.0
    %616 = vmatpush1.msra.mxu0 0.0
    %617 = vmatprep.subr.mxu0 0.0
    %618 = vmatpush1.msra.mxu0 0.0
    %619 = vmatprep.subr.mxu0 0.0
    %620 = vmatpush1.msra.mxu0 0.0
    %621 = vmatprep.subr.mxu0 0.0
    %622 = vmatpush1.msra.mxu0 0.0
    %623 = vmatprep.subr.mxu0 0.0
    %624 = vmatpush1.msra.mxu0 0.0
    %625 = vmatprep.subr.mxu0 0.0
    %626 = vmatpush1.msra.mxu0 0.0
    %627 = vmatprep.subr.mxu0 0.0
    %628 = vmatpush1.msra.mxu0 0.0
    %629 = vmatprep.mubr.f32.mxu0 0.0
    %v630 = vand.u32 %v109, 4294901760
    %631 = vmatmul.mubr.f32.gmra.mrb[0].mxu0 %v630
    %v632 = vpop.f32.mrb[0].mxu0
    %v633 = vadd.f32 %v552, %v632
    %v634 = vpop.f32.mrb[0].mxu0
    %635 = vmatprep.mubr.f32.mxu0 0.0
    %v636 = vand.u32 %v112, 4294901760
    %637 = vmatmul.mubr.f32.gmra.mrb[0].mxu0 %v636
    %v638 = vpop.f32.mrb[0].mxu0
    %v639 = vadd.f32 %v558, %v638
    %v640 = vpop.f32.mrb[0].mxu0
    %641 = vdwg.mxu0
    %vm642 = vcmp.ge.f32.partialorder %v633, 0.0
    %vm643 = vcmp.ge.f32.partialorder %v639, 0.0
    %v644 = vmul.f32 %v633, 0.01
    %v645 = vmul.f32 %v639, 0.01
    %v646 = vsel %vm642, %v633, %v644
    %v647 = vsel %vm643, %v639, %v645
    %v648 = vld [vmem:[#allocation6] sm:$0xff]
    %v649 = vld [vmem:[#allocation6 + $0x8] sm:$0xff]
    %v650 = vld [vmem:[#allocation6 + $0x10] sm:$0xff]
    %v651 = vld [vmem:[#allocation6 + $0x18] sm:$0xff]
    %v652 = vld [vmem:[%s5] sm:$0x1]
    %v654 = vlaneseq
    %v655 = vshrl.u32 %v654, 7
    %v656 = vsub.s32 0, %v655
    %v657 = vrot.slane %v652, %v656
    %659 = vmatprep.subr.mxu0 0.0
    %v660 = vand.u32 %v648, 4294901760
    %661 = vmatpush1.msra.mxu0 %v660
    %662 = vmatprep.subr.mxu0 0.0
    %v663 = vand.u32 %v649, 4294901760
    %664 = vmatpush1.msra.mxu0 %v663
    %665 = vmatprep.subr.mxu0 0.0
    %v666 = vand.u32 %v650, 4294901760
    %667 = vmatpush1.msra.mxu0 %v666
    %668 = vmatprep.subr.mxu0 0.0
    %v669 = vand.u32 %v651, 4294901760
    %670 = vmatpush1.msra.mxu0 %v669
    %671 = vmatprep.subr.mxu0 0.0
    %672 = vmatpush1.msra.mxu0 0.0
    %673 = vmatprep.subr.mxu0 0.0
    %674 = vmatpush1.msra.mxu0 0.0
    %675 = vmatprep.subr.mxu0 0.0
    %676 = vmatpush1.msra.mxu0 0.0
    %677 = vmatprep.subr.mxu0 0.0
    %678 = vmatpush1.msra.mxu0 0.0
    %679 = vmatprep.subr.mxu0 0.0
    %680 = vmatpush1.msra.mxu0 0.0
    %681 = vmatprep.subr.mxu0 0.0
    %682 = vmatpush1.msra.mxu0 0.0
    %683 = vmatprep.subr.mxu0 0.0
    %684 = vmatpush1.msra.mxu0 0.0
    %685 = vmatprep.subr.mxu0 0.0
    %686 = vmatpush1.msra.mxu0 0.0
    %687 = vmatprep.subr.mxu0 0.0
    %688 = vmatpush1.msra.mxu0 0.0
    %689 = vmatprep.subr.mxu0 0.0
    %690 = vmatpush1.msra.mxu0 0.0
    %691 = vmatprep.subr.mxu0 0.0
    %692 = vmatpush1.msra.mxu0 0.0
    %693 = vmatprep.subr.mxu0 0.0
    %694 = vmatpush1.msra.mxu0 0.0
    %695 = vmatprep.subr.mxu0 0.0
    %696 = vmatpush1.msra.mxu0 0.0
    %697 = vmatprep.subr.mxu0 0.0
    %698 = vmatpush1.msra.mxu0 0.0
    %699 = vmatprep.subr.mxu0 0.0
    %700 = vmatpush1.msra.mxu0 0.0
    %701 = vmatprep.subr.mxu0 0.0
    %702 = vmatpush1.msra.mxu0 0.0
    %703 = vmatprep.subr.mxu0 0.0
    %704 = vmatpush1.msra.mxu0 0.0
    %705 = vmatprep.subr.mxu0 0.0
    %706 = vmatpush1.msra.mxu0 0.0
    %707 = vmatprep.subr.mxu0 0.0
    %708 = vmatpush1.msra.mxu0 0.0
    %709 = vmatprep.subr.mxu0 0.0
    %710 = vmatpush1.msra.mxu0 0.0
    %711 = vmatprep.subr.mxu0 0.0
    %712 = vmatpush1.msra.mxu0 0.0
    %713 = vmatprep.subr.mxu0 0.0
    %714 = vmatpush1.msra.mxu0 0.0
    %715 = vmatprep.subr.mxu0 0.0
    %716 = vmatpush1.msra.mxu0 0.0
    %717 = vmatprep.subr.mxu0 0.0
    %718 = vmatpush1.msra.mxu0 0.0
    %719 = vmatprep.subr.mxu0 0.0
    %720 = vmatpush1.msra.mxu0 0.0
    %721 = vmatprep.subr.mxu0 0.0
    %722 = vmatpush1.msra.mxu0 0.0
    %723 = vmatprep.subr.mxu0 0.0
    %724 = vmatpush1.msra.mxu0 0.0
    %725 = vmatprep.subr.mxu0 0.0
    %726 = vmatpush1.msra.mxu0 0.0
    %727 = vmatprep.mubr.f32.mxu0 0.0
    %v728 = vand.u32 %v109, 4294901760
    %v729 = vsub.f32 %v109, %v728
    %v730 = vand.u32 %v729, 4294901760
    %v731 = vsub.f32 %v729, %v730
    %v732 = vand.u32 %v731, 4294901760
    %733 = vmatmul.mubr.f32.gmra.mrb[0].mxu0 %v732
    %v734 = vpop.f32.mrb[0].mxu0
    %v735 = vadd.f32 %v657, %v734
    %v736 = vpop.f32.mrb[0].mxu0
    %737 = vmatprep.mubr.f32.mxu0 0.0
    %v738 = vand.u32 %v112, 4294901760
    %v739 = vsub.f32 %v112, %v738
    %v740 = vand.u32 %v739, 4294901760
    %v741 = vsub.f32 %v739, %v740
    %v742 = vand.u32 %v741, 4294901760
    %743 = vmatmul.mubr.f32.gmra.mrb[0].mxu0 %v742
    %v744 = vpop.f32.mrb[0].mxu0
    %v745 = vadd.f32 %v657, %v744
    %v746 = vpop.f32.mrb[0].mxu0
    %747 = vdwg.mxu0
    %748 = vmatprep.subr.mxu0 0.0
    %v749 = vand.u32 %v648, 4294901760
    %v750 = vsub.f32 %v648, %v749
    %v751 = vand.u32 %v750, 4294901760
    %v752 = vsub.f32 %v750, %v751
    %v753 = vand.u32 %v752, 4294901760
    %754 = vmatpush1.msra.mxu0 %v753
    %755 = vmatprep.subr.mxu0 0.0
    %v756 = vand.u32 %v649, 4294901760
    %v757 = vsub.f32 %v649, %v756
    %v758 = vand.u32 %v757, 4294901760
    %v759 = vsub.f32 %v757, %v758
    %v760 = vand.u32 %v759, 4294901760
    %761 = vmatpush1.msra.mxu0 %v760
    %762 = vmatprep.subr.mxu0 0.0
    %v763 = vand.u32 %v650, 4294901760
    %v764 = vsub.f32 %v650, %v763
    %v765 = vand.u32 %v764, 4294901760
    %v766 = vsub.f32 %v764, %v765
    %v767 = vand.u32 %v766, 4294901760
    %768 = vmatpush1.msra.mxu0 %v767
    %769 = vmatprep.subr.mxu0 0.0
    %v770 = vand.u32 %v651, 4294901760
    %v771 = vsub.f32 %v651, %v770
    %v772 = vand.u32 %v771, 4294901760
    %v773 = vsub.f32 %v771, %v772
    %v774 = vand.u32 %v773, 4294901760
    %775 = vmatpush1.msra.mxu0 %v774
    %776 = vmatprep.subr.mxu0 0.0
    %777 = vmatpush1.msra.mxu0 0.0
    %778 = vmatprep.subr.mxu0 0.0
    %779 = vmatpush1.msra.mxu0 0.0
    %780 = vmatprep.subr.mxu0 0.0
    %781 = vmatpush1.msra.mxu0 0.0
    %782 = vmatprep.subr.mxu0 0.0
    %783 = vmatpush1.msra.mxu0 0.0
    %784 = vmatprep.subr.mxu0 0.0
    %785 = vmatpush1.msra.mxu0 0.0
    %786 = vmatprep.subr.mxu0 0.0
    %787 = vmatpush1.msra.mxu0 0.0
    %788 = vmatprep.subr.mxu0 0.0
    %789 = vmatpush1.msra.mxu0 0.0
    %790 = vmatprep.subr.mxu0 0.0
    %791 = vmatpush1.msra.mxu0 0.0
    %792 = vmatprep.subr.mxu0 0.0
    %793 = vmatpush1.msra.mxu0 0.0
    %794 = vmatprep.subr.mxu0 0.0
    %795 = vmatpush1.msra.mxu0 0.0
    %796 = vmatprep.subr.mxu0 0.0
    %797 = vmatpush1.msra.mxu0 0.0
    %798 = vmatprep.subr.mxu0 0.0
    %799 = vmatpush1.msra.mxu0 0.0
    %800 = vmatprep.subr.mxu0 0.0
    %801 = vmatpush1.msra.mxu0 0.0
    %802 = vmatprep.subr.mxu0 0.0
    %803 = vmatpush1.msra.mxu0 0.0
    %804 = vmatprep.subr.mxu0 0.0
    %805 = vmatpush1.msra.mxu0 0.0
    %806 = vmatprep.subr.mxu0 0.0
    %807 = vmatpush1.msra.mxu0 0.0
    %808 = vmatprep.subr.mxu0 0.0
    %809 = vmatpush1.msra.mxu0 0.0
    %810 = vmatprep.subr.mxu0 0.0
    %811 = vmatpush1.msra.mxu0 0.0
    %812 = vmatprep.subr.mxu0 0.0
    %813 = vmatpush1.msra.mxu0 0.0
    %814 = vmatprep.subr.mxu0 0.0
    %815 = vmatpush1.msra.mxu0 0.0
    %816 = vmatprep.subr.mxu0 0.0
    %817 = vmatpush1.msra.mxu0 0.0
    %818 = vmatprep.subr.mxu0 0.0
    %819 = vmatpush1.msra.mxu0 0.0
    %820 = vmatprep.subr.mxu0 0.0
    %821 = vmatpush1.msra.mxu0 0.0
    %822 = vmatprep.subr.mxu0 0.0
    %823 = vmatpush1.msra.mxu0 0.0
    %824 = vmatprep.subr.mxu0 0.0
    %825 = vmatpush1.msra.mxu0 0.0
    %826 = vmatprep.subr.mxu0 0.0
    %827 = vmatpush1.msra.mxu0 0.0
    %828 = vmatprep.subr.mxu0 0.0
    %829 = vmatpush1.msra.mxu0 0.0
    %830 = vmatprep.subr.mxu0 0.0
    %831 = vmatpush1.msra.mxu0 0.0
    %832 = vmatprep.mubr.f32.mxu0 0.0
    %v833 = vand.u32 %v109, 4294901760
    %834 = vmatmul.mubr.f32.gmra.mrb[0].mxu0 %v833
    %v835 = vpop.f32.mrb[0].mxu0
    %v836 = vadd.f32 %v735, %v835
    %v837 = vpop.f32.mrb[0].mxu0
    %838 = vmatprep.mubr.f32.mxu0 0.0
    %v839 = vand.u32 %v112, 4294901760
    %840 = vmatmul.mubr.f32.gmra.mrb[0].mxu0 %v839
    %v841 = vpop.f32.mrb[0].mxu0
    %v842 = vadd.f32 %v745, %v841
    %v843 = vpop.f32.mrb[0].mxu0
    %844 = vdwg.mxu0
    %845 = vmatprep.subr.mxu0 0.0
    %v846 = vand.u32 %v648, 4294901760
    %v847 = vsub.f32 %v648, %v846
    %848 = vmatpush1.msra.mxu0 %v847
    %849 = vmatprep.subr.mxu0 0.0
    %v850 = vand.u32 %v649, 4294901760
    %v851 = vsub.f32 %v649, %v850
    %852 = vmatpush1.msra.mxu0 %v851
    %853 = vmatprep.subr.mxu0 0.0
    %v854 = vand.u32 %v650, 4294901760
    %v855 = vsub.f32 %v650, %v854
    %856 = vmatpush1.msra.mxu0 %v855
    %857 = vmatprep.subr.mxu0 0.0
    %v858 = vand.u32 %v651, 4294901760
    %v859 = vsub.f32 %v651, %v858
    %860 = vmatpush1.msra.mxu0 %v859
    %861 = vmatprep.subr.mxu0 0.0
    %862 = vmatpush1.msra.mxu0 0.0
    %863 = vmatprep.subr.mxu0 0.0
    %864 = vmatpush1.msra.mxu0 0.0
    %865 = vmatprep.subr.mxu0 0.0
    %866 = vmatpush1.msra.mxu0 0.0
    %867 = vmatprep.subr.mxu0 0.0
    %868 = vmatpush1.msra.mxu0 0.0
    %869 = vmatprep.subr.mxu0 0.0
    %870 = vmatpush1.msra.mxu0 0.0
    %871 = vmatprep.subr.mxu0 0.0
    %872 = vmatpush1.msra.mxu0 0.0
    %873 = vmatprep.subr.mxu0 0.0
    %874 = vmatpush1.msra.mxu0 0.0
    %875 = vmatprep.subr.mxu0 0.0
    %876 = vmatpush1.msra.mxu0 0.0
    %877 = vmatprep.subr.mxu0 0.0
    %878 = vmatpush1.msra.mxu0 0.0
    %879 = vmatprep.subr.mxu0 0.0
    %880 = vmatpush1.msra.mxu0 0.0
    %881 = vmatprep.subr.mxu0 0.0
    %882 = vmatpush1.msra.mxu0 0.0
    %883 = vmatprep.subr.mxu0 0.0
    %884 = vmatpush1.msra.mxu0 0.0
    %885 = vmatprep.subr.mxu0 0.0
    %886 = vmatpush1.msra.mxu0 0.0
    %887 = vmatprep.subr.mxu0 0.0
    %888 = vmatpush1.msra.mxu0 0.0
    %889 = vmatprep.subr.mxu0 0.0
    %890 = vmatpush1.msra.mxu0 0.0
    %891 = vmatprep.subr.mxu0 0.0
    %892 = vmatpush1.msra.mxu0 0.0
    %893 = vmatprep.subr.mxu0 0.0
    %894 = vmatpush1.msra.mxu0 0.0
    %895 = vmatprep.subr.mxu0 0.0
    %896 = vmatpush1.msra.mxu0 0.0
    %897 = vmatprep.subr.mxu0 0.0
    %898 = vmatpush1.msra.mxu0 0.0
    %899 = vmatprep.subr.mxu0 0.0
    %900 = vmatpush1.msra.mxu0 0.0
    %901 = vmatprep.subr.mxu0 0.0
    %902 = vmatpush1.msra.mxu0 0.0
    %903 = vmatprep.subr.mxu0 0.0
    %904 = vmatpush1.msra.mxu0 0.0
    %905 = vmatprep.subr.mxu0 0.0
    %906 = vmatpush1.msra.mxu0 0.0
    %907 = vmatprep.subr.mxu0 0.0
    %908 = vmatpush1.msra.mxu0 0.0
    %909 = vmatprep.subr.mxu0 0.0
    %910 = vmatpush1.msra.mxu0 0.0
    %911 = vmatprep.subr.mxu0 0.0
    %912 = vmatpush1.msra.mxu0 0.0
    %913 = vmatprep.subr.mxu0 0.0
    %914 = vmatpush1.msra.mxu0 0.0
    %915 = vmatprep.subr.mxu0 0.0
    %916 = vmatpush1.msra.mxu0 0.0
    %917 = vmatprep.mubr.f32.mxu0 0.0
    %v918 = vand.u32 %v109, 4294901760
    %v919 = vsub.f32 %v109, %v918
    %920 = vmatmul.mubr.f32.gmra.mrb[0].mxu0 %v919
    %v921 = vpop.f32.mrb[0].mxu0
    %v922 = vadd.f32 %v836, %v921
    %v923 = vpop.f32.mrb[0].mxu0
    %924 = vmatprep.mubr.f32.mxu0 0.0
    %v925 = vand.u32 %v112, 4294901760
    %v926 = vsub.f32 %v112, %v925
    %927 = vmatmul.mubr.f32.gmra.mrb[0].mxu0 %v926
    %v928 = vpop.f32.mrb[0].mxu0
    %v929 = vadd.f32 %v842, %v928
    %v930 = vpop.f32.mrb[0].mxu0
    %931 = vdwg.mxu0
    %932 = vmatprep.subr.mxu0 0.0
    %v933 = vand.u32 %v648, 4294901760
    %934 = vmatpush1.msra.mxu0 %v933
    %935 = vmatprep.subr.mxu0 0.0
    %v936 = vand.u32 %v649, 4294901760
    %937 = vmatpush1.msra.mxu0 %v936
    %938 = vmatprep.subr.mxu0 0.0
    %v939 = vand.u32 %v650, 4294901760
    %940 = vmatpush1.msra.mxu0 %v939
    %941 = vmatprep.subr.mxu0 0.0
    %v942 = vand.u32 %v651, 4294901760
    %943 = vmatpush1.msra.mxu0 %v942
    %944 = vmatprep.subr.mxu0 0.0
    %945 = vmatpush1.msra.mxu0 0.0
    %946 = vmatprep.subr.mxu0 0.0
    %947 = vmatpush1.msra.mxu0 0.0
    %948 = vmatprep.subr.mxu0 0.0
    %949 = vmatpush1.msra.mxu0 0.0
    %950 = vmatprep.subr.mxu0 0.0
    %951 = vmatpush1.msra.mxu0 0.0
    %952 = vmatprep.subr.mxu0 0.0
    %953 = vmatpush1.msra.mxu0 0.0
    %954 = vmatprep.subr.mxu0 0.0
    %955 = vmatpush1.msra.mxu0 0.0
    %956 = vmatprep.subr.mxu0 0.0
    %957 = vmatpush1.msra.mxu0 0.0
    %958 = vmatprep.subr.mxu0 0.0
    %959 = vmatpush1.msra.mxu0 0.0
    %960 = vmatprep.subr.mxu0 0.0
    %961 = vmatpush1.msra.mxu0 0.0
    %962 = vmatprep.subr.mxu0 0.0
    %963 = vmatpush1.msra.mxu0 0.0
    %964 = vmatprep.subr.mxu0 0.0
    %965 = vmatpush1.msra.mxu0 0.0
    %966 = vmatprep.subr.mxu0 0.0
    %967 = vmatpush1.msra.mxu0 0.0
    %968 = vmatprep.subr.mxu0 0.0
    %969 = vmatpush1.msra.mxu0 0.0
    %970 = vmatprep.subr.mxu0 0.0
    %971 = vmatpush1.msra.mxu0 0.0
    %972 = vmatprep.subr.mxu0 0.0
    %973 = vmatpush1.msra.mxu0 0.0
    %974 = vmatprep.subr.mxu0 0.0
    %975 = vmatpush1.msra.mxu0 0.0
    %976 = vmatprep.subr.mxu0 0.0
    %977 = vmatpush1.msra.mxu0 0.0
    %978 = vmatprep.subr.mxu0 0.0
    %979 = vmatpush1.msra.mxu0 0.0
    %980 = vmatprep.subr.mxu0 0.0
    %981 = vmatpush1.msra.mxu0 0.0
    %982 = vmatprep.subr.mxu0 0.0
    %983 = vmatpush1.msra.mxu0 0.0
    %984 = vmatprep.subr.mxu0 0.0
    %985 = vmatpush1.msra.mxu0 0.0
    %986 = vmatprep.subr.mxu0 0.0
    %987 = vmatpush1.msra.mxu0 0.0
    %988 = vmatprep.subr.mxu0 0.0
    %989 = vmatpush1.msra.mxu0 0.0
    %990 = vmatprep.subr.mxu0 0.0
    %991 = vmatpush1.msra.mxu0 0.0
    %992 = vmatprep.subr.mxu0 0.0
    %993 = vmatpush1.msra.mxu0 0.0
    %994 = vmatprep.subr.mxu0 0.0
    %995 = vmatpush1.msra.mxu0 0.0
    %996 = vmatprep.subr.mxu0 0.0
    %997 = vmatpush1.msra.mxu0 0.0
    %998 = vmatprep.subr.mxu0 0.0
    %999 = vmatpush1.msra.mxu0 0.0
    %1000 = vmatprep.mubr.f32.mxu0 0.0
    %v1001 = vand.u32 %v109, 4294901760
    %v1002 = vsub.f32 %v109, %v1001
    %v1003 = vand.u32 %v1002, 4294901760
    %1004 = vmatmul.mubr.f32.gmra.mrb[0].mxu0 %v1003
    %v1005 = vpop.f32.mrb[0].mxu0
    %v1006 = vadd.f32 %v922, %v1005
    %v1007 = vpop.f32.mrb[0].mxu0
    %1008 = vmatprep.mubr.f32.mxu0 0.0
    %v1009 = vand.u32 %v112, 4294901760
    %v1010 = vsub.f32 %v112, %v1009
    %v1011 = vand.u32 %v1010, 4294901760
    %1012 = vmatmul.mubr.f32.gmra.mrb[0].mxu0 %v1011
    %v1013 = vpop.f32.mrb[0].mxu0
    %v1014 = vadd.f32 %v929, %v1013
    %v1015 = vpop.f32.mrb[0].mxu0
    %1016 = vdwg.mxu0
    %1017 = vmatprep.subr.mxu0 0.0
    %v1018 = vand.u32 %v648, 4294901760
    %v1019 = vsub.f32 %v648, %v1018
    %v1020 = vand.u32 %v1019, 4294901760
    %1021 = vmatpush1.msra.mxu0 %v1020
    %1022 = vmatprep.subr.mxu0 0.0
    %v1023 = vand.u32 %v649, 4294901760
    %v1024 = vsub.f32 %v649, %v1023
    %v1025 = vand.u32 %v1024, 4294901760
    %1026 = vmatpush1.msra.mxu0 %v1025
    %1027 = vmatprep.subr.mxu0 0.0
    %v1028 = vand.u32 %v650, 4294901760
    %v1029 = vsub.f32 %v650, %v1028
    %v1030 = vand.u32 %v1029, 4294901760
    %1031 = vmatpush1.msra.mxu0 %v1030
    %1032 = vmatprep.subr.mxu0 0.0
    %v1033 = vand.u32 %v651, 4294901760
    %v1034 = vsub.f32 %v651, %v1033
    %v1035 = vand.u32 %v1034, 4294901760
    %1036 = vmatpush1.msra.mxu0 %v1035
    %1037 = vmatprep.subr.mxu0 0.0
    %1038 = vmatpush1.msra.mxu0 0.0
    %1039 = vmatprep.subr.mxu0 0.0
    %1040 = vmatpush1.msra.mxu0 0.0
    %1041 = vmatprep.subr.mxu0 0.0
    %1042 = vmatpush1.msra.mxu0 0.0
    %1043 = vmatprep.subr.mxu0 0.0
    %1044 = vmatpush1.msra.mxu0 0.0
    %1045 = vmatprep.subr.mxu0 0.0
    %1046 = vmatpush1.msra.mxu0 0.0
    %1047 = vmatprep.subr.mxu0 0.0
    %1048 = vmatpush1.msra.mxu0 0.0
    %1049 = vmatprep.subr.mxu0 0.0
    %1050 = vmatpush1.msra.mxu0 0.0
    %1051 = vmatprep.subr.mxu0 0.0
    %1052 = vmatpush1.msra.mxu0 0.0
    %1053 = vmatprep.subr.mxu0 0.0
    %1054 = vmatpush1.msra.mxu0 0.0
    %1055 = vmatprep.subr.mxu0 0.0
    %1056 = vmatpush1.msra.mxu0 0.0
    %1057 = vmatprep.subr.mxu0 0.0
    %1058 = vmatpush1.msra.mxu0 0.0
    %1059 = vmatprep.subr.mxu0 0.0
    %1060 = vmatpush1.msra.mxu0 0.0
    %1061 = vmatprep.subr.mxu0 0.0
    %1062 = vmatpush1.msra.mxu0 0.0
    %1063 = vmatprep.subr.mxu0 0.0
    %1064 = vmatpush1.msra.mxu0 0.0
    %1065 = vmatprep.subr.mxu0 0.0
    %1066 = vmatpush1.msra.mxu0 0.0
    %1067 = vmatprep.subr.mxu0 0.0
    %1068 = vmatpush1.msra.mxu0 0.0
    %1069 = vmatprep.subr.mxu0 0.0
    %1070 = vmatpush1.msra.mxu0 0.0
    %1071 = vmatprep.subr.mxu0 0.0
    %1072 = vmatpush1.msra.mxu0 0.0
    %1073 = vmatprep.subr.mxu0 0.0
    %1074 = vmatpush1.msra.mxu0 0.0
    %1075 = vmatprep.subr.mxu0 0.0
    %1076 = vmatpush1.msra.mxu0 0.0
    %1077 = vmatprep.subr.mxu0 0.0
    %1078 = vmatpush1.msra.mxu0 0.0
    %1079 = vmatprep.subr.mxu0 0.0
    %1080 = vmatpush1.msra.mxu0 0.0
    %1081 = vmatprep.subr.mxu0 0.0
    %1082 = vmatpush1.msra.mxu0 0.0
    %1083 = vmatprep.subr.mxu0 0.0
    %1084 = vmatpush1.msra.mxu0 0.0
    %1085 = vmatprep.subr.mxu0 0.0
    %1086 = vmatpush1.msra.mxu0 0.0
    %1087 = vmatprep.subr.mxu0 0.0
    %1088 = vmatpush1.msra.mxu0 0.0
    %1089 = vmatprep.subr.mxu0 0.0
    %1090 = vmatpush1.msra.mxu0 0.0
    %1091 = vmatprep.subr.mxu0 0.0
    %1092 = vmatpush1.msra.mxu0 0.0
    %1093 = vmatprep.mubr.f32.mxu0 0.0
    %v1094 = vand.u32 %v109, 4294901760
    %1095 = vmatmul.mubr.f32.gmra.mrb[0].mxu0 %v1094
    %v1096 = vpop.f32.mrb[0].mxu0
    %v1097 = vadd.f32 %v1006, %v1096
    %v1098 = vpop.f32.mrb[0].mxu0
    %1099 = vmatprep.mubr.f32.mxu0 0.0
    %v1100 = vand.u32 %v112, 4294901760
    %1101 = vmatmul.mubr.f32.gmra.mrb[0].mxu0 %v1100
    %v1102 = vpop.f32.mrb[0].mxu0
    %v1103 = vadd.f32 %v1014, %v1102
    %v1104 = vpop.f32.mrb[0].mxu0
    %1105 = vdwg.mxu0
    %1106 = vmatprep.subr.mxu0 0.0
    %v1107 = vand.u32 %v648, 4294901760
    %1108 = vmatpush1.msra.mxu0 %v1107
    %1109 = vmatprep.subr.mxu0 0.0
    %v1110 = vand.u32 %v649, 4294901760
    %1111 = vmatpush1.msra.mxu0 %v1110
    %1112 = vmatprep.subr.mxu0 0.0
    %v1113 = vand.u32 %v650, 4294901760
    %1114 = vmatpush1.msra.mxu0 %v1113
    %1115 = vmatprep.subr.mxu0 0.0
    %v1116 = vand.u32 %v651, 4294901760
    %1117 = vmatpush1.msra.mxu0 %v1116
    %1118 = vmatprep.subr.mxu0 0.0
    %1119 = vmatpush1.msra.mxu0 0.0
    %1120 = vmatprep.subr.mxu0 0.0
    %1121 = vmatpush1.msra.mxu0 0.0
    %1122 = vmatprep.subr.mxu0 0.0
    %1123 = vmatpush1.msra.mxu0 0.0
    %1124 = vmatprep.subr.mxu0 0.0
    %1125 = vmatpush1.msra.mxu0 0.0
    %1126 = vmatprep.subr.mxu0 0.0
    %1127 = vmatpush1.msra.mxu0 0.0
    %1128 = vmatprep.subr.mxu0 0.0
    %1129 = vmatpush1.msra.mxu0 0.0
    %1130 = vmatprep.subr.mxu0 0.0
    %1131 = vmatpush1.msra.mxu0 0.0
    %1132 = vmatprep.subr.mxu0 0.0
    %1133 = vmatpush1.msra.mxu0 0.0
    %1134 = vmatprep.subr.mxu0 0.0
    %1135 = vmatpush1.msra.mxu0 0.0
    %1136 = vmatprep.subr.mxu0 0.0
    %1137 = vmatpush1.msra.mxu0 0.0
    %1138 = vmatprep.subr.mxu0 0.0
    %1139 = vmatpush1.msra.mxu0 0.0
    %1140 = vmatprep.subr.mxu0 0.0
    %1141 = vmatpush1.msra.mxu0 0.0
    %1142 = vmatprep.subr.mxu0 0.0
    %1143 = vmatpush1.msra.mxu0 0.0
    %1144 = vmatprep.subr.mxu0 0.0
    %1145 = vmatpush1.msra.mxu0 0.0
    %1146 = vmatprep.subr.mxu0 0.0
    %1147 = vmatpush1.msra.mxu0 0.0
    %1148 = vmatprep.subr.mxu0 0.0
    %1149 = vmatpush1.msra.mxu0 0.0
    %1150 = vmatprep.subr.mxu0 0.0
    %1151 = vmatpush1.msra.mxu0 0.0
    %1152 = vmatprep.subr.mxu0 0.0
    %1153 = vmatpush1.msra.mxu0 0.0
    %1154 = vmatprep.subr.mxu0 0.0
    %1155 = vmatpush1.msra.mxu0 0.0
    %1156 = vmatprep.subr.mxu0 0.0
    %1157 = vmatpush1.msra.mxu0 0.0
    %1158 = vmatprep.subr.mxu0 0.0
    %1159 = vmatpush1.msra.mxu0 0.0
    %1160 = vmatprep.subr.mxu0 0.0
    %1161 = vmatpush1.msra.mxu0 0.0
    %1162 = vmatprep.subr.mxu0 0.0
    %1163 = vmatpush1.msra.mxu0 0.0
    %1164 = vmatprep.subr.mxu0 0.0
    %1165 = vmatpush1.msra.mxu0 0.0
    %1166 = vmatprep.subr.mxu0 0.0
    %1167 = vmatpush1.msra.mxu0 0.0
    %1168 = vmatprep.subr.mxu0 0.0
    %1169 = vmatpush1.msra.mxu0 0.0
    %1170 = vmatprep.subr.mxu0 0.0
    %1171 = vmatpush1.msra.mxu0 0.0
    %1172 = vmatprep.subr.mxu0 0.0
    %1173 = vmatpush1.msra.mxu0 0.0
    %1174 = vmatprep.mubr.f32.mxu0 0.0
    %v1175 = vand.u32 %v109, 4294901760
    %1176 = vmatmul.mubr.f32.gmra.mrb[0].mxu0 %v1175
    %v1177 = vpop.f32.mrb[0].mxu0
    %v1178 = vadd.f32 %v1097, %v1177
    %v1179 = vpop.f32.mrb[0].mxu0
    %1180 = vmatprep.mubr.f32.mxu0 0.0
    %v1181 = vand.u32 %v112, 4294901760
    %1182 = vmatmul.mubr.f32.gmra.mrb[0].mxu0 %v1181
    %v1183 = vpop.f32.mrb[0].mxu0
    %v1184 = vadd.f32 %v1103, %v1183
    %v1185 = vpop.f32.mrb[0].mxu0
    %1186 = vdwg.mxu0
    %v1187 = vld [vmem:[%s3] sm:$0x1]
    %v1189 = vlaneseq
    %v1190 = vshrl.u32 %v1189, 7
    %v1191 = vsub.s32 0, %v1190
    %v1192 = vrot.slane %v1187, %v1191
    %v1194 = vmul.f32 %v646, %v1192
    %v1195 = vmul.f32 %v647, %v1192
    %v1196 = vsel %vm107, %v1194, 0.0
    %1197 = vadd.xlane.f32.xlu0 %v1196
    %v1198 = vpop.xlane.xlu0 %1197
    %v1199 = vsel %vm107, %v1195, 0.0
    %1200 = vadd.xlane.f32.xlu0 %v1199
    %v1201 = vpop.xlane.xlu0 %1200
    %v1202 = vlaneseq
    %v1203 = vshrl.u32 %v1202, 7
    %vm1204 = vcmp.eq.s32.totalorder %v1203, 0
    %v1205 = vsel %vm1204, -inf, %v1198
    %v1206 = vsel %vm1204, -inf, %v1201
    %v1207 = vrot.slane %v1205, 4
    %v1208 = vmax.f32 %v1205, %v1207
    %v1209 = vrot.slane %v1208, 2
    %v1210 = vmax.f32 %v1208, %v1209
    %v1211 = vrot.slane %v1210, 1
    %v1212 = vmax.f32 %v1210, %v1211
    %v1213 = vrot.slane %v1206, 4
    %v1214 = vmax.f32 %v1206, %v1213
    %v1215 = vrot.slane %v1214, 2
    %v1216 = vmax.f32 %v1214, %v1215
    %v1217 = vrot.slane %v1216, 1
    %v1218 = vmax.f32 %v1216, %v1217
    %v1219 = vsub.f32 %v1205, %v1212
    %v1220 = vsub.f32 %v1206, %v1218
    %v1221 = vmul.f32 %v1219, 1.442695
    %v1222 = vpow.pop %v1221
    %v1223 = vmul.f32 %v1220, 1.442695
    %v1224 = vpow.pop %v1223
    %v1225 = vrot.slane %v1222, 4
    %v1226 = vadd.f32 %v1222, %v1225
    %v1227 = vrot.slane %v1226, 2
    %v1228 = vadd.f32 %v1226, %v1227
    %v1229 = vrot.slane %v1228, 1
    %v1230 = vadd.f32 %v1228, %v1229
    %v1231 = vrot.slane %v1224, 4
    %v1232 = vadd.f32 %v1224, %v1231
    %v1233 = vrot.slane %v1232, 2
    %v1234 = vadd.f32 %v1232, %v1233
    %v1235 = vrot.slane %v1234, 1
    %v1236 = vadd.f32 %v1234, %v1235
    %v1237 = vrcp.pop %v1230
    %v1238 = vrcp.pop %v1236
    %v1239 = vmul.f32 %v1222, %v1237
    %v1240 = vmul.f32 %v1224, %v1238
    %v1241 = vmul.f32 %v1239, %v1178
    %v1242 = vmul.f32 %v1240, %v1184
    %v1243 = vsel %vm107, %v1241, 0.0
    %v1244 = vrot.slane %v1243, 4
    %v1245 = vadd.f32 %v1243, %v1244
    %v1246 = vrot.slane %v1245, 2
    %v1247 = vadd.f32 %v1245, %v1246
    %v1248 = vrot.slane %v1247, 1
    %v1249 = vadd.f32 %v1247, %v1248
    %v1250 = vsel %vm107, %v1242, 0.0
    %v1251 = vrot.slane %v1250, 4
    %v1252 = vadd.f32 %v1250, %v1251
    %v1253 = vrot.slane %v1252, 2
    %v1254 = vadd.f32 %v1252, %v1253
    %v1255 = vrot.slane %v1254, 1
    %v1256 = vadd.f32 %v1254, %v1255
    %v1257 = vld [vmem:[#allocation7] sm:$0xff]
    %v1258 = vld [vmem:[#allocation7 + $0x8] sm:$0xff]
    %v1259 = vld [vmem:[#allocation7 + $0x10] sm:$0xff]
    %v1260 = vld [vmem:[#allocation7 + $0x18] sm:$0xff]
    %v1261 = vld [vmem:[%s7] sm:$0x1]
    %v1263 = vlaneseq
    %v1264 = vshrl.u32 %v1263, 7
    %v1265 = vsub.s32 0, %v1264
    %v1266 = vrot.slane %v1261, %v1265
    %vm1270 = vcmask 1041409
    %v1271 = vsel %vm1270, %v1256, %v1249
    %v1272 = vsel %vm107, %v1271, 0
    %1274 = vmatprep.subr.mxu0 0.0
    %v1275 = vand.u32 %v1257, 4294901760
    %1276 = vmatpush1.msra.mxu0 %v1275
    %1277 = vmatprep.subr.mxu0 0.0
    %v1278 = vand.u32 %v1258, 4294901760
    %1279 = vmatpush1.msra.mxu0 %v1278
    %1280 = vmatprep.subr.mxu0 0.0
    %v1281 = vand.u32 %v1259, 4294901760
    %1282 = vmatpush1.msra.mxu0 %v1281
    %1283 = vmatprep.subr.mxu0 0.0
    %v1284 = vand.u32 %v1260, 4294901760
    %1285 = vmatpush1.msra.mxu0 %v1284
    %1286 = vmatprep.subr.mxu0 0.0
    %1287 = vmatpush1.msra.mxu0 0.0
    %1288 = vmatprep.subr.mxu0 0.0
    %1289 = vmatpush1.msra.mxu0 0.0
    %1290 = vmatprep.subr.mxu0 0.0
    %1291 = vmatpush1.msra.mxu0 0.0
    %1292 = vmatprep.subr.mxu0 0.0
    %1293 = vmatpush1.msra.mxu0 0.0
    %1294 = vmatprep.subr.mxu0 0.0
    %1295 = vmatpush1.msra.mxu0 0.0
    %1296 = vmatprep.subr.mxu0 0.0
    %1297 = vmatpush1.msra.mxu0 0.0
    %1298 = vmatprep.subr.mxu0 0.0
    %1299 = vmatpush1.msra.mxu0 0.0
    %1300 = vmatprep.subr.mxu0 0.0
    %1301 = vmatpush1.msra.mxu0 0.0
    %1302 = vmatprep.subr.mxu0 0.0
    %1303 = vmatpush1.msra.mxu0 0.0
    %1304 = vmatprep.subr.mxu0 0.0
    %1305 = vmatpush1.msra.mxu0 0.0
    %1306 = vmatprep.subr.mxu0 0.0
    %1307 = vmatpush1.msra.mxu0 0.0
    %1308 = vmatprep.subr.mxu0 0.0
    %1309 = vmatpush1.msra.mxu0 0.0
    %1310 = vmatprep.subr.mxu0 0.0
    %1311 = vmatpush1.msra.mxu0 0.0
    %1312 = vmatprep.subr.mxu0 0.0
    %1313 = vmatpush1.msra.mxu0 0.0
    %1314 = vmatprep.subr.mxu0 0.0
    %1315 = vmatpush1.msra.mxu0 0.0
    %1316 = vmatprep.subr.mxu0 0.0
    %1317 = vmatpush1.msra.mxu0 0.0
    %1318 = vmatprep.subr.mxu0 0.0
    %1319 = vmatpush1.msra.mxu0 0.0
    %1320 = vmatprep.subr.mxu0 0.0
    %1321 = vmatpush1.msra.mxu0 0.0
    %1322 = vmatprep.subr.mxu0 0.0
    %1323 = vmatpush1.msra.mxu0 0.0
    %1324 = vmatprep.subr.mxu0 0.0
    %1325 = vmatpush1.msra.mxu0 0.0
    %1326 = vmatprep.subr.mxu0 0.0
    %1327 = vmatpush1.msra.mxu0 0.0
    %1328 = vmatprep.subr.mxu0 0.0
    %1329 = vmatpush1.msra.mxu0 0.0
    %1330 = vmatprep.subr.mxu0 0.0
    %1331 = vmatpush1.msra.mxu0 0.0
    %1332 = vmatprep.subr.mxu0 0.0
    %1333 = vmatpush1.msra.mxu0 0.0
    %1334 = vmatprep.subr.mxu0 0.0
    %1335 = vmatpush1.msra.mxu0 0.0
    %1336 = vmatprep.subr.mxu0 0.0
    %1337 = vmatpush1.msra.mxu0 0.0
    %1338 = vmatprep.subr.mxu0 0.0
    %1339 = vmatpush1.msra.mxu0 0.0
    %1340 = vmatprep.subr.mxu0 0.0
    %1341 = vmatpush1.msra.mxu0 0.0
    %1342 = vmatprep.mubr.f32.mxu0 0.0
    %v1343 = vand.u32 %v1272, 4294901760
    %v1344 = vsub.f32 %v1272, %v1343
    %v1345 = vand.u32 %v1344, 4294901760
    %v1346 = vsub.f32 %v1344, %v1345
    %v1347 = vand.u32 %v1346, 4294901760
    %1348 = vmatmul.mubr.f32.gmra.mrb[0].mxu0 %v1347
    %v1349 = vpop.f32.mrb[0].mxu0
    %v1350 = vadd.f32 %v1266, %v1349
    %v1351 = vpop.f32.mrb[0].mxu0
    %1352 = vdwg.mxu0
    %1353 = vmatprep.subr.mxu0 0.0
    %v1354 = vand.u32 %v1257, 4294901760
    %v1355 = vsub.f32 %v1257, %v1354
    %v1356 = vand.u32 %v1355, 4294901760
    %v1357 = vsub.f32 %v1355, %v1356
    %v1358 = vand.u32 %v1357, 4294901760
    %1359 = vmatpush1.msra.mxu0 %v1358
    %1360 = vmatprep.subr.mxu0 0.0
    %v1361 = vand.u32 %v1258, 4294901760
    %v1362 = vsub.f32 %v1258, %v1361
    %v1363 = vand.u32 %v1362, 4294901760
    %v1364 = vsub.f32 %v1362, %v1363
    %v1365 = vand.u32 %v1364, 4294901760
    %1366 = vmatpush1.msra.mxu0 %v1365
    %1367 = vmatprep.subr.mxu0 0.0
    %v1368 = vand.u32 %v1259, 4294901760
    %v1369 = vsub.f32 %v1259, %v1368
    %v1370 = vand.u32 %v1369, 4294901760
    %v1371 = vsub.f32 %v1369, %v1370
    %v1372 = vand.u32 %v1371, 4294901760
    %1373 = vmatpush1.msra.mxu0 %v1372
    %1374 = vmatprep.subr.mxu0 0.0
    %v1375 = vand.u32 %v1260, 4294901760
    %v1376 = vsub.f32 %v1260, %v1375
    %v1377 = vand.u32 %v1376, 4294901760
    %v1378 = vsub.f32 %v1376, %v1377
    %v1379 = vand.u32 %v1378, 4294901760
    %1380 = vmatpush1.msra.mxu0 %v1379
    %1381 = vmatprep.subr.mxu0 0.0
    %1382 = vmatpush1.msra.mxu0 0.0
    %1383 = vmatprep.subr.mxu0 0.0
    %1384 = vmatpush1.msra.mxu0 0.0
    %1385 = vmatprep.subr.mxu0 0.0
    %1386 = vmatpush1.msra.mxu0 0.0
    %1387 = vmatprep.subr.mxu0 0.0
    %1388 = vmatpush1.msra.mxu0 0.0
    %1389 = vmatprep.subr.mxu0 0.0
    %1390 = vmatpush1.msra.mxu0 0.0
    %1391 = vmatprep.subr.mxu0 0.0
    %1392 = vmatpush1.msra.mxu0 0.0
    %1393 = vmatprep.subr.mxu0 0.0
    %1394 = vmatpush1.msra.mxu0 0.0
    %1395 = vmatprep.subr.mxu0 0.0
    %1396 = vmatpush1.msra.mxu0 0.0
    %1397 = vmatprep.subr.mxu0 0.0
    %1398 = vmatpush1.msra.mxu0 0.0
    %1399 = vmatprep.subr.mxu0 0.0
    %1400 = vmatpush1.msra.mxu0 0.0
    %1401 = vmatprep.subr.mxu0 0.0
    %1402 = vmatpush1.msra.mxu0 0.0
    %1403 = vmatprep.subr.mxu0 0.0
    %1404 = vmatpush1.msra.mxu0 0.0
    %1405 = vmatprep.subr.mxu0 0.0
    %1406 = vmatpush1.msra.mxu0 0.0
    %1407 = vmatprep.subr.mxu0 0.0
    %1408 = vmatpush1.msra.mxu0 0.0
    %1409 = vmatprep.subr.mxu0 0.0
    %1410 = vmatpush1.msra.mxu0 0.0
    %1411 = vmatprep.subr.mxu0 0.0
    %1412 = vmatpush1.msra.mxu0 0.0
    %1413 = vmatprep.subr.mxu0 0.0
    %1414 = vmatpush1.msra.mxu0 0.0
    %1415 = vmatprep.subr.mxu0 0.0
    %1416 = vmatpush1.msra.mxu0 0.0
    %1417 = vmatprep.subr.mxu0 0.0
    %1418 = vmatpush1.msra.mxu0 0.0
    %1419 = vmatprep.subr.mxu0 0.0
    %1420 = vmatpush1.msra.mxu0 0.0
    %1421 = vmatprep.subr.mxu0 0.0
    %1422 = vmatpush1.msra.mxu0 0.0
    %1423 = vmatprep.subr.mxu0 0.0
    %1424 = vmatpush1.msra.mxu0 0.0
    %1425 = vmatprep.subr.mxu0 0.0
    %1426 = vmatpush1.msra.mxu0 0.0
    %1427 = vmatprep.subr.mxu0 0.0
    %1428 = vmatpush1.msra.mxu0 0.0
    %1429 = vmatprep.subr.mxu0 0.0
    %1430 = vmatpush1.msra.mxu0 0.0
    %1431 = vmatprep.subr.mxu0 0.0
    %1432 = vmatpush1.msra.mxu0 0.0
    %1433 = vmatprep.subr.mxu0 0.0
    %1434 = vmatpush1.msra.mxu0 0.0
    %1435 = vmatprep.subr.mxu0 0.0
    %1436 = vmatpush1.msra.mxu0 0.0
    %1437 = vmatprep.mubr.f32.mxu0 0.0
    %v1438 = vand.u32 %v1272, 4294901760
    %1439 = vmatmul.mubr.f32.gmra.mrb[0].mxu0 %v1438
    %v1440 = vpop.f32.mrb[0].mxu0
    %v1441 = vadd.f32 %v1350, %v1440
    %v1442 = vpop.f32.mrb[0].mxu0
    %1443 = vdwg.mxu0
    %1444 = vmatprep.subr.mxu0 0.0
    %v1445 = vand.u32 %v1257, 4294901760
    %v1446 = vsub.f32 %v1257, %v1445
    %1447 = vmatpush1.msra.mxu0 %v1446
    %1448 = vmatprep.subr.mxu0 0.0
    %v1449 = vand.u32 %v1258, 4294901760
    %v1450 = vsub.f32 %v1258, %v1449
    %1451 = vmatpush1.msra.mxu0 %v1450
    %1452 = vmatprep.subr.mxu0 0.0
    %v1453 = vand.u32 %v1259, 4294901760
    %v1454 = vsub.f32 %v1259, %v1453
    %1455 = vmatpush1.msra.mxu0 %v1454
    %1456 = vmatprep.subr.mxu0 0.0
    %v1457 = vand.u32 %v1260, 4294901760
    %v1458 = vsub.f32 %v1260, %v1457
    %1459 = vmatpush1.msra.mxu0 %v1458
    %1460 = vmatprep.subr.mxu0 0.0
    %1461 = vmatpush1.msra.mxu0 0.0
    %1462 = vmatprep.subr.mxu0 0.0
    %1463 = vmatpush1.msra.mxu0 0.0
    %1464 = vmatprep.subr.mxu0 0.0
    %1465 = vmatpush1.msra.mxu0 0.0
    %1466 = vmatprep.subr.mxu0 0.0
    %1467 = vmatpush1.msra.mxu0 0.0
    %1468 = vmatprep.subr.mxu0 0.0
    %1469 = vmatpush1.msra.mxu0 0.0
    %1470 = vmatprep.subr.mxu0 0.0
    %1471 = vmatpush1.msra.mxu0 0.0
    %1472 = vmatprep.subr.mxu0 0.0
    %1473 = vmatpush1.msra.mxu0 0.0
    %1474 = vmatprep.subr.mxu0 0.0
    %1475 = vmatpush1.msra.mxu0 0.0
    %1476 = vmatprep.subr.mxu0 0.0
    %1477 = vmatpush1.msra.mxu0 0.0
    %1478 = vmatprep.subr.mxu0 0.0
    %1479 = vmatpush1.msra.mxu0 0.0
    %1480 = vmatprep.subr.mxu0 0.0
    %1481 = vmatpush1.msra.mxu0 0.0
    %1482 = vmatprep.subr.mxu0 0.0
    %1483 = vmatpush1.msra.mxu0 0.0
    %1484 = vmatprep.subr.mxu0 0.0
    %1485 = vmatpush1.msra.mxu0 0.0
    %1486 = vmatprep.subr.mxu0 0.0
    %1487 = vmatpush1.msra.mxu0 0.0
    %1488 = vmatprep.subr.mxu0 0.0
    %1489 = vmatpush1.msra.mxu0 0.0
    %1490 = vmatprep.subr.mxu0 0.0
    %1491 = vmatpush1.msra.mxu0 0.0
    %1492 = vmatprep.subr.mxu0 0.0
    %1493 = vmatpush1.msra.mxu0 0.0
    %1494 = vmatprep.subr.mxu0 0.0
    %1495 = vmatpush1.msra.mxu0 0.0
    %1496 = vmatprep.subr.mxu0 0.0
    %1497 = vmatpush1.msra.mxu0 0.0
    %1498 = vmatprep.subr.mxu0 0.0
    %1499 = vmatpush1.msra.mxu0 0.0
    %1500 = vmatprep.subr.mxu0 0.0
    %1501 = vmatpush1.msra.mxu0 0.0
    %1502 = vmatprep.subr.mxu0 0.0
    %1503 = vmatpush1.msra.mxu0 0.0
    %1504 = vmatprep.subr.mxu0 0.0
    %1505 = vmatpush1.msra.mxu0 0.0
    %1506 = vmatprep.subr.mxu0 0.0
    %1507 = vmatpush1.msra.mxu0 0.0
    %1508 = vmatprep.subr.mxu0 0.0
    %1509 = vmatpush1.msra.mxu0 0.0
    %1510 = vmatprep.subr.mxu0 0.0
    %1511 = vmatpush1.msra.mxu0 0.0
    %1512 = vmatprep.subr.mxu0 0.0
    %1513 = vmatpush1.msra.mxu0 0.0
    %1514 = vmatprep.subr.mxu0 0.0
    %1515 = vmatpush1.msra.mxu0 0.0
    %1516 = vmatprep.mubr.f32.mxu0 0.0
    %v1517 = vand.u32 %v1272, 4294901760
    %v1518 = vsub.f32 %v1272, %v1517
    %1519 = vmatmul.mubr.f32.gmra.mrb[0].mxu0 %v1518
    %v1520 = vpop.f32.mrb[0].mxu0
    %v1521 = vadd.f32 %v1441, %v1520
    %v1522 = vpop.f32.mrb[0].mxu0
    %1523 = vdwg.mxu0
    %1524 = vmatprep.subr.mxu0 0.0
    %v1525 = vand.u32 %v1257, 4294901760
    %1526 = vmatpush1.msra.mxu0 %v1525
    %1527 = vmatprep.subr.mxu0 0.0
    %v1528 = vand.u32 %v1258, 4294901760
    %1529 = vmatpush1.msra.mxu0 %v1528
    %1530 = vmatprep.subr.mxu0 0.0
    %v1531 = vand.u32 %v1259, 4294901760
    %1532 = vmatpush1.msra.mxu0 %v1531
    %1533 = vmatprep.subr.mxu0 0.0
    %v1534 = vand.u32 %v1260, 4294901760
    %1535 = vmatpush1.msra.mxu0 %v1534
    %1536 = vmatprep.subr.mxu0 0.0
    %1537 = vmatpush1.msra.mxu0 0.0
    %1538 = vmatprep.subr.mxu0 0.0
    %1539 = vmatpush1.msra.mxu0 0.0
    %1540 = vmatprep.subr.mxu0 0.0
    %1541 = vmatpush1.msra.mxu0 0.0
    %1542 = vmatprep.subr.mxu0 0.0
    %1543 = vmatpush1.msra.mxu0 0.0
    %1544 = vmatprep.subr.mxu0 0.0
    %1545 = vmatpush1.msra.mxu0 0.0
    %1546 = vmatprep.subr.mxu0 0.0
    %1547 = vmatpush1.msra.mxu0 0.0
    %1548 = vmatprep.subr.mxu0 0.0
    %1549 = vmatpush1.msra.mxu0 0.0
    %1550 = vmatprep.subr.mxu0 0.0
    %1551 = vmatpush1.msra.mxu0 0.0
    %1552 = vmatprep.subr.mxu0 0.0
    %1553 = vmatpush1.msra.mxu0 0.0
    %1554 = vmatprep.subr.mxu0 0.0
    %1555 = vmatpush1.msra.mxu0 0.0
    %1556 = vmatprep.subr.mxu0 0.0
    %1557 = vmatpush1.msra.mxu0 0.0
    %1558 = vmatprep.subr.mxu0 0.0
    %1559 = vmatpush1.msra.mxu0 0.0
    %1560 = vmatprep.subr.mxu0 0.0
    %1561 = vmatpush1.msra.mxu0 0.0
    %1562 = vmatprep.subr.mxu0 0.0
    %1563 = vmatpush1.msra.mxu0 0.0
    %1564 = vmatprep.subr.mxu0 0.0
    %1565 = vmatpush1.msra.mxu0 0.0
    %1566 = vmatprep.subr.mxu0 0.0
    %1567 = vmatpush1.msra.mxu0 0.0
    %1568 = vmatprep.subr.mxu0 0.0
    %1569 = vmatpush1.msra.mxu0 0.0
    %1570 = vmatprep.subr.mxu0 0.0
    %1571 = vmatpush1.msra.mxu0 0.0
    %1572 = vmatprep.subr.mxu0 0.0
    %1573 = vmatpush1.msra.mxu0 0.0
    %1574 = vmatprep.subr.mxu0 0.0
    %1575 = vmatpush1.msra.mxu0 0.0
    %1576 = vmatprep.subr.mxu0 0.0
    %1577 = vmatpush1.msra.mxu0 0.0
    %1578 = vmatprep.subr.mxu0 0.0
    %1579 = vmatpush1.msra.mxu0 0.0
    %1580 = vmatprep.subr.mxu0 0.0
    %1581 = vmatpush1.msra.mxu0 0.0
    %1582 = vmatprep.subr.mxu0 0.0
    %1583 = vmatpush1.msra.mxu0 0.0
    %1584 = vmatprep.subr.mxu0 0.0
    %1585 = vmatpush1.msra.mxu0 0.0
    %1586 = vmatprep.subr.mxu0 0.0
    %1587 = vmatpush1.msra.mxu0 0.0
    %1588 = vmatprep.subr.mxu0 0.0
    %1589 = vmatpush1.msra.mxu0 0.0
    %1590 = vmatprep.subr.mxu0 0.0
    %1591 = vmatpush1.msra.mxu0 0.0
    %1592 = vmatprep.mubr.f32.mxu0 0.0
    %v1593 = vand.u32 %v1272, 4294901760
    %v1594 = vsub.f32 %v1272, %v1593
    %v1595 = vand.u32 %v1594, 4294901760
    %1596 = vmatmul.mubr.f32.gmra.mrb[0].mxu0 %v1595
    %v1597 = vpop.f32.mrb[0].mxu0
    %v1598 = vadd.f32 %v1521, %v1597
    %v1599 = vpop.f32.mrb[0].mxu0
    %1600 = vdwg.mxu0
    %1601 = vmatprep.subr.mxu0 0.0
    %v1602 = vand.u32 %v1257, 4294901760
    %v1603 = vsub.f32 %v1257, %v1602
    %v1604 = vand.u32 %v1603, 4294901760
    %1605 = vmatpush1.msra.mxu0 %v1604
    %1606 = vmatprep.subr.mxu0 0.0
    %v1607 = vand.u32 %v1258, 4294901760
    %v1608 = vsub.f32 %v1258, %v1607
    %v1609 = vand.u32 %v1608, 4294901760
    %1610 = vmatpush1.msra.mxu0 %v1609
    %1611 = vmatprep.subr.mxu0 0.0
    %v1612 = vand.u32 %v1259, 4294901760
    %v1613 = vsub.f32 %v1259, %v1612
    %v1614 = vand.u32 %v1613, 4294901760
    %1615 = vmatpush1.msra.mxu0 %v1614
    %1616 = vmatprep.subr.mxu0 0.0
    %v1617 = vand.u32 %v1260, 4294901760
    %v1618 = vsub.f32 %v1260, %v1617
    %v1619 = vand.u32 %v1618, 4294901760
    %1620 = vmatpush1.msra.mxu0 %v1619
    %1621 = vmatprep.subr.mxu0 0.0
    %1622 = vmatpush1.msra.mxu0 0.0
    %1623 = vmatprep.subr.mxu0 0.0
    %1624 = vmatpush1.msra.mxu0 0.0
    %1625 = vmatprep.subr.mxu0 0.0
    %1626 = vmatpush1.msra.mxu0 0.0
    %1627 = vmatprep.subr.mxu0 0.0
    %1628 = vmatpush1.msra.mxu0 0.0
    %1629 = vmatprep.subr.mxu0 0.0
    %1630 = vmatpush1.msra.mxu0 0.0
    %1631 = vmatprep.subr.mxu0 0.0
    %1632 = vmatpush1.msra.mxu0 0.0
    %1633 = vmatprep.subr.mxu0 0.0
    %1634 = vmatpush1.msra.mxu0 0.0
    %1635 = vmatprep.subr.mxu0 0.0
    %1636 = vmatpush1.msra.mxu0 0.0
    %1637 = vmatprep.subr.mxu0 0.0
    %1638 = vmatpush1.msra.mxu0 0.0
    %1639 = vmatprep.subr.mxu0 0.0
    %1640 = vmatpush1.msra.mxu0 0.0
    %1641 = vmatprep.subr.mxu0 0.0
    %1642 = vmatpush1.msra.mxu0 0.0
    %1643 = vmatprep.subr.mxu0 0.0
    %1644 = vmatpush1.msra.mxu0 0.0
    %1645 = vmatprep.subr.mxu0 0.0
    %1646 = vmatpush1.msra.mxu0 0.0
    %1647 = vmatprep.subr.mxu0 0.0
    %1648 = vmatpush1.msra.mxu0 0.0
    %1649 = vmatprep.subr.mxu0 0.0
    %1650 = vmatpush1.msra.mxu0 0.0
    %1651 = vmatprep.subr.mxu0 0.0
    %1652 = vmatpush1.msra.mxu0 0.0
    %1653 = vmatprep.subr.mxu0 0.0
    %1654 = vmatpush1.msra.mxu0 0.0
    %1655 = vmatprep.subr.mxu0 0.0
    %1656 = vmatpush1.msra.mxu0 0.0
    %1657 = vmatprep.subr.mxu0 0.0
    %1658 = vmatpush1.msra.mxu0 0.0
    %1659 = vmatprep.subr.mxu0 0.0
    %1660 = vmatpush1.msra.mxu0 0.0
    %1661 = vmatprep.subr.mxu0 0.0
    %1662 = vmatpush1.msra.mxu0 0.0
    %1663 = vmatprep.subr.mxu0 0.0
    %1664 = vmatpush1.msra.mxu0 0.0
    %1665 = vmatprep.subr.mxu0 0.0
    %1666 = vmatpush1.msra.mxu0 0.0
    %1667 = vmatprep.subr.mxu0 0.0
    %1668 = vmatpush1.msra.mxu0 0.0
    %1669 = vmatprep.subr.mxu0 0.0
    %1670 = vmatpush1.msra.mxu0 0.0
    %1671 = vmatprep.subr.mxu0 0.0
    %1672 = vmatpush1.msra.mxu0 0.0
    %1673 = vmatprep.subr.mxu0 0.0
    %1674 = vmatpush1.msra.mxu0 0.0
    %1675 = vmatprep.subr.mxu0 0.0
    %1676 = vmatpush1.msra.mxu0 0.0
    %1677 = vmatprep.mubr.f32.mxu0 0.0
    %v1678 = vand.u32 %v1272, 4294901760
    %1679 = vmatmul.mubr.f32.gmra.mrb[0].mxu0 %v1678
    %v1680 = vpop.f32.mrb[0].mxu0
    %v1681 = vadd.f32 %v1598, %v1680
    %v1682 = vpop.f32.mrb[0].mxu0
    %1683 = vdwg.mxu0
    %1684 = vmatprep.subr.mxu0 0.0
    %v1685 = vand.u32 %v1257, 4294901760
    %1686 = vmatpush1.msra.mxu0 %v1685
    %1687 = vmatprep.subr.mxu0 0.0
    %v1688 = vand.u32 %v1258, 4294901760
    %1689 = vmatpush1.msra.mxu0 %v1688
    %1690 = vmatprep.subr.mxu0 0.0
    %v1691 = vand.u32 %v1259, 4294901760
    %1692 = vmatpush1.msra.mxu0 %v1691
    %1693 = vmatprep.subr.mxu0 0.0
    %v1694 = vand.u32 %v1260, 4294901760
    %1695 = vmatpush1.msra.mxu0 %v1694
    %1696 = vmatprep.subr.mxu0 0.0
    %1697 = vmatpush1.msra.mxu0 0.0
    %1698 = vmatprep.subr.mxu0 0.0
    %1699 = vmatpush1.msra.mxu0 0.0
    %1700 = vmatprep.subr.mxu0 0.0
    %1701 = vmatpush1.msra.mxu0 0.0
    %1702 = vmatprep.subr.mxu0 0.0
    %1703 = vmatpush1.msra.mxu0 0.0
    %1704 = vmatprep.subr.mxu0 0.0
    %1705 = vmatpush1.msra.mxu0 0.0
    %1706 = vmatprep.subr.mxu0 0.0
    %1707 = vmatpush1.msra.mxu0 0.0
    %1708 = vmatprep.subr.mxu0 0.0
    %1709 = vmatpush1.msra.mxu0 0.0
    %1710 = vmatprep.subr.mxu0 0.0
    %1711 = vmatpush1.msra.mxu0 0.0
    %1712 = vmatprep.subr.mxu0 0.0
    %1713 = vmatpush1.msra.mxu0 0.0
    %1714 = vmatprep.subr.mxu0 0.0
    %1715 = vmatpush1.msra.mxu0 0.0
    %1716 = vmatprep.subr.mxu0 0.0
    %1717 = vmatpush1.msra.mxu0 0.0
    %1718 = vmatprep.subr.mxu0 0.0
    %1719 = vmatpush1.msra.mxu0 0.0
    %1720 = vmatprep.subr.mxu0 0.0
    %1721 = vmatpush1.msra.mxu0 0.0
    %1722 = vmatprep.subr.mxu0 0.0
    %1723 = vmatpush1.msra.mxu0 0.0
    %1724 = vmatprep.subr.mxu0 0.0
    %1725 = vmatpush1.msra.mxu0 0.0
    %1726 = vmatprep.subr.mxu0 0.0
    %1727 = vmatpush1.msra.mxu0 0.0
    %1728 = vmatprep.subr.mxu0 0.0
    %1729 = vmatpush1.msra.mxu0 0.0
    %1730 = vmatprep.subr.mxu0 0.0
    %1731 = vmatpush1.msra.mxu0 0.0
    %1732 = vmatprep.subr.mxu0 0.0
    %1733 = vmatpush1.msra.mxu0 0.0
    %1734 = vmatprep.subr.mxu0 0.0
    %1735 = vmatpush1.msra.mxu0 0.0
    %1736 = vmatprep.subr.mxu0 0.0
    %1737 = vmatpush1.msra.mxu0 0.0
    %1738 = vmatprep.subr.mxu0 0.0
    %1739 = vmatpush1.msra.mxu0 0.0
    %1740 = vmatprep.subr.mxu0 0.0
    %1741 = vmatpush1.msra.mxu0 0.0
    %1742 = vmatprep.subr.mxu0 0.0
    %1743 = vmatpush1.msra.mxu0 0.0
    %1744 = vmatprep.subr.mxu0 0.0
    %1745 = vmatpush1.msra.mxu0 0.0
    %1746 = vmatprep.subr.mxu0 0.0
    %1747 = vmatpush1.msra.mxu0 0.0
    %1748 = vmatprep.subr.mxu0 0.0
    %1749 = vmatpush1.msra.mxu0 0.0
    %1750 = vmatprep.subr.mxu0 0.0
    %1751 = vmatpush1.msra.mxu0 0.0
    %1752 = vmatprep.mubr.f32.mxu0 0.0
    %v1753 = vand.u32 %v1272, 4294901760
    %1754 = vmatmul.mubr.f32.gmra.mrb[0].mxu0 %v1753
    %v1755 = vpop.f32.mrb[0].mxu0
    %v1756 = vadd.f32 %v1681, %v1755
    %v1757 = vpop.f32.mrb[0].mxu0
    %1758 = vdwg.mxu0
    %v1761 = vunpack.c.l.s4 1966171168
    %v1762 = vunpack.c.0.s8 %v1761
    %v1763 = vlaneseq
    %v1764 = vshrl.u32 %v1763, 7
    %v1765 = vsub.s32 %v1762, %v1764
    %v1766 = vrot.slane %v1756, %v1765
    %v1767 = vcombine.high %v1766, %v1766
    %v1769 = vunpack.c.l.s4 1966171168
    %v1770 = vunpack.c.0.s8 %v1769
    %v1771 = vlaneseq
    %v1772 = vshrl.u32 %v1771, 7
    %v1773 = vsub.s32 %v1770, %v1772
    %v1774 = vrot.slane %v1766, %v1773
    %v1776 = vunpack.c.l.s4 1966171168
    %v1777 = vunpack.c.0.s8 %v1776
    %v1778 = vlaneseq
    %v1779 = vshrl.u32 %v1778, 7
    %v1780 = vsub.s32 %v1777, %v1779
    %v1781 = vrot.slane %v1767, %v1780
    %v1782 = vlaneseq
    %v1783 = vshrl.u32 %v1782, 7
    %v1784 = vsub.s32 0, %v1783
    %v1785 = vrot.slane %v1774, %v1784
    %v1786 = vlaneseq
    %v1787 = vshrl.u32 %v1786, 7
    %v1788 = vsub.s32 0, %v1787
    %v1789 = vrot.slane %v1781, %v1788
    %v1792 = vadd.f32 %v94, %v1785
    %v1793 = vadd.f32 %v95, %v1789
    %vm1794 = vcmp.ge.f32.partialorder %v1792, 0.0
    %vm1795 = vcmp.ge.f32.partialorder %v1793, 0.0
    %v1796 = vmul.f32 %v1792, 0.01
    %v1797 = vmul.f32 %v1793, 0.01
    %v1798 = vsel %vm1794, %v1792, %v1796
    %v1799 = vsel %vm1795, %v1793, %v1797
    %vm1800 = vcmask 261121
    %1801 = vst.msk [vmem:[%s8 - $0x1] sm:$0xfe] %vm1800, %v1798
    %1802 = vst.msk [vmem:[%s8 + $0x7] sm:$0xfe] %vm1800, %v1799
    // Predicated region
    $region50: #{tpu_custom_call.1} parent=1 // pred_check
      _
    $region51: #{tpu_custom_call.1} parent=1 // pred_check_branch
      %1804 = sbr.rel (0) target = $region53
    $region52: #{tpu_custom_call.1} parent=1 // pred_region
      _
    $region53: #{tpu_custom_call.1} parent=1 // pred_fallthru
      _
    // Predicated region
    $region54: #{tpu_custom_call.1} parent=1 // pred_check
      _
    $region55: #{tpu_custom_call.1} parent=1 // pred_check_branch
      %1806 = sbr.rel (0) target = $region57
    $region56: #{tpu_custom_call.1} parent=1 // pred_region
      _
    $region57: #{tpu_custom_call.1} parent=1 // pred_fallthru
      _
    %1807 = vsyncpa [#allocation3], 1
    %1808 = vsyncpa [#allocation5], 1
    %1809 = vsyncpa [#allocation8], 1

</llo_original>
